<compile_context>
chip_gen: v7x
topology: tpu7x:2x2x1
jax: 0.10.0
libtpu: 0.0.40
codegen_flags: <defaults>
</compile_context>

<pallas_src>
import math
import functools

import jax
import jax.numpy as jnp
from jax.experimental import pallas as pl
from jax.experimental.pallas import tpu as pltpu

BN_EPS = 1e-5
MATMUL_DTYPE = jnp.bfloat16        # bf16 matmuls, f32 accumulate / epilogue


# ----------------------------------------------------------------------------
# Fused DoubleConv kernel
# ----------------------------------------------------------------------------
def _double_conv_kernel(x_ref, w1_ref, sc1_ref, sh1_ref, w2_ref, sc2_ref, sh2_ref,
                        o_ref, mid_ref, *, H, W):
    """One batch element per grid step.

    x_ref:   (1, Cin, Lin)  zero-padded image, spatial flattened with stride Wp
                            (Lin = (H+3)*Wp gives slack for the shift trick).
    w*_ref:  (9, Cout, Cin) weights, index k = dy*3 + dx  (== torch w[co,ci,dy,dx]).
    sc*/sh*: (Cout, 1)      folded BN(eval) scale / shift (conv bias folded in).
    o_ref:   (1, Cout, H*W) lane-dense output.
    mid_ref: (Cmid, Lin)    VMEM scratch holding the padded intermediate.
    """
    Wp = W + 2
    L = H * Wp
    cmid = w1_ref.shape[1]
    cout = w2_ref.shape[1]

    # ---- conv1: 9 shifted-window matmuls on the flattened padded input ------
    x = x_ref[0].astype(w1_ref.dtype)                    # cast once for the MXU
    acc1 = jnp.zeros((cmid, L), jnp.float32)
    for dy in range(3):
        for dx in range(3):
            s = dy * Wp + dx
            acc1 += jnp.dot(w1_ref[dy * 3 + dx], x[:, s:s + L],
                            preferred_element_type=jnp.float32)
    # BN(eval) folded into scale/shift (conv bias already folded in), then ReLU.
    y1 = jnp.maximum(acc1 * sc1_ref[...] + sh1_ref[...], 0.0)
    y1 = y1.astype(mid_ref.dtype)

    # ---- build the zero-padded intermediate in VMEM -------------------------
    # Row r = h*Wp + w of y1 is valid only for w < W; copying just those W
    # columns per row leaves the zero border of `mid` intact (so no mask op).
    mid_ref[...] = jnp.zeros_like(mid_ref)
    for h in range(H):
        mid_ref[:, (h + 1) * Wp + 1:(h + 1) * Wp + 1 + W] = y1[:, h * Wp:h * Wp + W]

    # ---- conv2 on the VMEM-resident intermediate ----------------------------
    m = mid_ref[...]
    acc2 = jnp.zeros((cout, L), jnp.float32)
    for dy in range(3):
        for dx in range(3):
            s = dy * Wp + dx
            acc2 += jnp.dot(w2_ref[dy * 3 + dx], m[:, s:s + L],
                            preferred_element_type=jnp.float32)
    y2 = jnp.maximum(acc2 * sc2_ref[...] + sh2_ref[...], 0.0).astype(o_ref.dtype)

    # ---- compact (Cout, H*Wp) -> lane-dense (Cout, H*W) output --------------
    for h in range(H):
        o_ref[0, :, h * W:(h + 1) * W] = y2[:, h * Wp:h * Wp + W]


# ----------------------------------------------------------------------------
# Wrapper
# ----------------------------------------------------------------------------
def double_conv(x, params):
    """x: (N, Cin, H, W) float32 NCHW (PyTorch layout). Returns (N, Cout, H, W)."""
    w1, sc1, sh1, w2, sc2, sh2 = params
    N, Cin, H, W = x.shape
    Cmid, Cout = w1.shape[1], w2.shape[1]
    Wp = W + 2
    Lin = (H + 3) * Wp                       # padded rows (1 top, 2 bottom) flattened
    HW = H * W

    # Single cheap pad (+ free contiguous reshape); no transposes, no post-slice.
    xp = jnp.pad(x, ((0, 0), (0, 0), (1, 2), (1, 1))).reshape(N, Cin, Lin)

    kernel = functools.partial(_double_conv_kernel, H=H, W=W)
    out = pl.pallas_call(
        kernel,
        out_shape=jax.ShapeDtypeStruct((N, Cout, HW), jnp.float32),
        grid=(N,),
        in_specs=[
            pl.BlockSpec((1, Cin, Lin), lambda n: (n, 0, 0)),
            pl.BlockSpec((9, Cmid, Cin), lambda n: (0, 0, 0)),
            pl.BlockSpec((Cmid, 1), lambda n: (0, 0)),
            pl.BlockSpec((Cmid, 1), lambda n: (0, 0)),
            pl.BlockSpec((9, Cout, Cmid), lambda n: (0, 0, 0)),
            pl.BlockSpec((Cout, 1), lambda n: (0, 0)),
            pl.BlockSpec((Cout, 1), lambda n: (0, 0)),
        ],
        out_specs=pl.BlockSpec((1, Cout, HW), lambda n: (n, 0, 0)),
        scratch_shapes=[pltpu.VMEM((Cmid, Lin), MATMUL_DTYPE)],
        compiler_params=pltpu.CompilerParams(
            dimension_semantics=("parallel",)),
    )(xp, w1, sc1, sh1, w2, sc2, sh2)
    return out.reshape(N, Cout, H, W)


# ----------------------------------------------------------------------------
# Deterministic synthetic parameters (Conv2d + BatchNorm2d(eval), folded)
# ----------------------------------------------------------------------------
def _conv_bn_params(key, cin, cout):
    kw, kb, kg, kbe, km, kv = jax.random.split(key, 6)
    # weight layout: (ky*3+kx, cout, cin)  == torch (cout, cin, ky, kx) permuted
    w = (jax.random.normal(kw, (9, cout, cin), jnp.float32)
         / math.sqrt(9.0 * cin)).astype(MATMUL_DTYPE)
    b = 0.01 * jax.random.normal(kb, (cout,), jnp.float32)
    gamma = 1.0 + 0.1 * jax.random.normal(kg, (cout,), jnp.float32)
    beta = 0.1 * jax.random.normal(kbe, (cout,), jnp.float32)
    mean = 0.1 * jax.random.normal(km, (cout,), jnp.float32)
    var = 1.0 + 0.2 * jax.random.uniform(kv, (cout,), jnp.float32)
    scale = gamma / jnp.sqrt(var + BN_EPS)
    shift = beta + (b - mean) * scale        # conv bias folded into the BN shift
    return (w, scale.reshape(cout, 1), shift.reshape(cout, 1))


def init_double_conv_params(key, in_channels, out_channels, mid_channels=None):
    if mid_channels is None:
        mid_channels = out_channels
    k1, k2 = jax.random.split(key)
    return _conv_bn_params(k1, in_channels, mid_channels) + \
           _conv_bn_params(k2, mid_channels, out_channels)


# ----------------------------------------------------------------------------
# Pure-JAX reference (f32 conv with the same folded scale/shift) for validation
# ----------------------------------------------------------------------------
def _reference(x, params):
    w1, sc1, sh1, w2, sc2, sh2 = params

    def layer(h, w, sc, sh):
        cout, cin = w.shape[1], w.shape[2]
        wk = w.astype(jnp.float32).reshape(3, 3, cout, cin).transpose(2, 3, 0, 1)
        y = jax.lax.conv_general_dilated(
            h, wk, window_strides=(1, 1), padding=((1, 1), (1, 1)),
            dimension_numbers=("NCHW", "OIHW", "NCHW"))
        y = y * sc.reshape(1, -1, 1, 1) + sh.reshape(1, -1, 1, 1)
        return jnp.maximum(y, 0.0)

    return layer(layer(x, w1, sc1, sh1), w2, sc2, sh2)


# ----------------------------------------------------------------------------
if __name__ == "__main__":
    in_channels, out_channels = 4, 8
    N, H, W = 2, 16, 16

    key = jax.random.PRNGKey(0)
    pkey, xkey = jax.random.split(key)
    params = init_double_conv_params(pkey, in_channels, out_channels)
    x = jax.random.normal(xkey, (N, in_channels, H, W), jnp.float32)

    y = jax.jit(double_conv)(x, params)
    y = jax.block_until_ready(y)

    assert y.shape == (N, out_channels, H, W) and y.dtype == jnp.float32
    y_ref = _reference(x, params)
    # bf16 matmul inputs -> loose tolerance vs the f32 reference.
    assert bool(jnp.allclose(y, y_ref, atol=5e-2, rtol=5e-2)), \
        float(jnp.max(jnp.abs(y - y_ref)))
    print("KERNEL_OK")
</pallas_src>

<mosaic_0001>
module attributes {stable_mosaic.version = 11 : i64} {
  func.func @_double_conv_kernel(%arg0: i32, %arg1: memref<1x4x342xf32, #tpu.memory_space<vmem>>, %arg2: memref<9x8x4xbf16, #tpu.memory_space<vmem>>, %arg3: memref<8x1xf32, #tpu.memory_space<vmem>>, %arg4: memref<8x1xf32, #tpu.memory_space<vmem>>, %arg5: memref<9x8x8xbf16, #tpu.memory_space<vmem>>, %arg6: memref<8x1xf32, #tpu.memory_space<vmem>>, %arg7: memref<8x1xf32, #tpu.memory_space<vmem>>, %arg8: memref<1x8x256xf32, #tpu.memory_space<vmem>>, %arg9: memref<8x342xbf16, #tpu.memory_space<vmem>>) attributes {dimension_semantics = [#tpu.dimension_semantics<parallel>], iteration_bounds = array<i64: 2>, scalar_prefetch = 0 : i64, scratch_operands = 1 : i64, tpu.core_type = #tpu.core_type<tc>, window_params = [{transform_indices = @transform_0, window_bounds = array<i64: 1, 4, 342>}, {pipeline_mode = #tpu.pipeline_mode<synchronous>, transform_indices = @transform_1, window_bounds = array<i64: 9, 8, 4>}, {pipeline_mode = #tpu.pipeline_mode<synchronous>, transform_indices = @transform_2, window_bounds = array<i64: 8, 1>}, {pipeline_mode = #tpu.pipeline_mode<synchronous>, transform_indices = @transform_3, window_bounds = array<i64: 8, 1>}, {pipeline_mode = #tpu.pipeline_mode<synchronous>, transform_indices = @transform_4, window_bounds = array<i64: 9, 8, 8>}, {pipeline_mode = #tpu.pipeline_mode<synchronous>, transform_indices = @transform_5, window_bounds = array<i64: 8, 1>}, {pipeline_mode = #tpu.pipeline_mode<synchronous>, transform_indices = @transform_6, window_bounds = array<i64: 8, 1>}, {transform_indices = @transform_7, window_bounds = array<i64: 1, 8, 256>}]} {
    %c0 = arith.constant 0 : index
    %c0_0 = arith.constant 0 : index
    %c0_1 = arith.constant 0 : index
    %0 = vector.load %arg1[%c0, %c0_0, %c0_1] : memref<1x4x342xf32, #tpu.memory_space<vmem>>, vector<1x4x342xf32>
    %1 = vector.shape_cast %0 : vector<1x4x342xf32> to vector<4x342xf32>
    %2 = arith.truncf %1 : vector<4x342xf32> to vector<4x342xbf16>
    %cst = arith.constant 0.000000e+00 : f32
    %3 = vector.broadcast %cst : f32 to vector<8x288xf32>
    %c0_2 = arith.constant 0 : index
    %c0_3 = arith.constant 0 : index
    %c0_4 = arith.constant 0 : index
    %4 = vector.load %arg2[%c0_2, %c0_3, %c0_4] : memref<9x8x4xbf16, #tpu.memory_space<vmem>>, vector<1x8x4xbf16>
    %5 = vector.shape_cast %4 : vector<1x8x4xbf16> to vector<8x4xbf16>
    %6 = vector.extract_strided_slice %2 {offsets = [0, 0], sizes = [4, 288], strides = [1, 1]} : vector<4x342xbf16> to vector<4x288xbf16>
    %cst_5 = arith.constant dense<0.000000e+00> : vector<8x288xf32>
    %7 = tpu.matmul %5, %6, %cst_5 {dimension_numbers = #tpu.dot_dimension_numbers<[1], [0], [0], [1], [0, 0, 1, 1], [], []>} : vector<8x4xbf16>, vector<4x288xbf16>, vector<8x288xf32> -> vector<8x288xf32>
    %8 = arith.addf %3, %7 : vector<8x288xf32>
    %c1 = arith.constant 1 : index
    %c0_6 = arith.constant 0 : index
    %c0_7 = arith.constant 0 : index
    %9 = vector.load %arg2[%c1, %c0_6, %c0_7] : memref<9x8x4xbf16, #tpu.memory_space<vmem>>, vector<1x8x4xbf16>
    %10 = vector.shape_cast %9 : vector<1x8x4xbf16> to vector<8x4xbf16>
    %11 = vector.extract_strided_slice %2 {offsets = [0, 1], sizes = [4, 288], strides = [1, 1]} : vector<4x342xbf16> to vector<4x288xbf16>
    %cst_8 = arith.constant dense<0.000000e+00> : vector<8x288xf32>
    %12 = tpu.matmul %10, %11, %cst_8 {dimension_numbers = #tpu.dot_dimension_numbers<[1], [0], [0], [1], [0, 0, 1, 1], [], []>} : vector<8x4xbf16>, vector<4x288xbf16>, vector<8x288xf32> -> vector<8x288xf32>
    %13 = arith.addf %8, %12 : vector<8x288xf32>
    %c2 = arith.constant 2 : index
    %c0_9 = arith.constant 0 : index
    %c0_10 = arith.constant 0 : index
    %14 = vector.load %arg2[%c2, %c0_9, %c0_10] : memref<9x8x4xbf16, #tpu.memory_space<vmem>>, vector<1x8x4xbf16>
    %15 = vector.shape_cast %14 : vector<1x8x4xbf16> to vector<8x4xbf16>
    %16 = vector.extract_strided_slice %2 {offsets = [0, 2], sizes = [4, 288], strides = [1, 1]} : vector<4x342xbf16> to vector<4x288xbf16>
    %cst_11 = arith.constant dense<0.000000e+00> : vector<8x288xf32>
    %17 = tpu.matmul %15, %16, %cst_11 {dimension_numbers = #tpu.dot_dimension_numbers<[1], [0], [0], [1], [0, 0, 1, 1], [], []>} : vector<8x4xbf16>, vector<4x288xbf16>, vector<8x288xf32> -> vector<8x288xf32>
    %18 = arith.addf %13, %17 : vector<8x288xf32>
    %c3 = arith.constant 3 : index
    %c0_12 = arith.constant 0 : index
    %c0_13 = arith.constant 0 : index
    %19 = vector.load %arg2[%c3, %c0_12, %c0_13] : memref<9x8x4xbf16, #tpu.memory_space<vmem>>, vector<1x8x4xbf16>
    %20 = vector.shape_cast %19 : vector<1x8x4xbf16> to vector<8x4xbf16>
    %21 = vector.extract_strided_slice %2 {offsets = [0, 18], sizes = [4, 288], strides = [1, 1]} : vector<4x342xbf16> to vector<4x288xbf16>
    %cst_14 = arith.constant dense<0.000000e+00> : vector<8x288xf32>
    %22 = tpu.matmul %20, %21, %cst_14 {dimension_numbers = #tpu.dot_dimension_numbers<[1], [0], [0], [1], [0, 0, 1, 1], [], []>} : vector<8x4xbf16>, vector<4x288xbf16>, vector<8x288xf32> -> vector<8x288xf32>
    %23 = arith.addf %18, %22 : vector<8x288xf32>
    %c4 = arith.constant 4 : index
    %c0_15 = arith.constant 0 : index
    %c0_16 = arith.constant 0 : index
    %24 = vector.load %arg2[%c4, %c0_15, %c0_16] : memref<9x8x4xbf16, #tpu.memory_space<vmem>>, vector<1x8x4xbf16>
    %25 = vector.shape_cast %24 : vector<1x8x4xbf16> to vector<8x4xbf16>
    %26 = vector.extract_strided_slice %2 {offsets = [0, 19], sizes = [4, 288], strides = [1, 1]} : vector<4x342xbf16> to vector<4x288xbf16>
    %cst_17 = arith.constant dense<0.000000e+00> : vector<8x288xf32>
    %27 = tpu.matmul %25, %26, %cst_17 {dimension_numbers = #tpu.dot_dimension_numbers<[1], [0], [0], [1], [0, 0, 1, 1], [], []>} : vector<8x4xbf16>, vector<4x288xbf16>, vector<8x288xf32> -> vector<8x288xf32>
    %28 = arith.addf %23, %27 : vector<8x288xf32>
    %c5 = arith.constant 5 : index
    %c0_18 = arith.constant 0 : index
    %c0_19 = arith.constant 0 : index
    %29 = vector.load %arg2[%c5, %c0_18, %c0_19] : memref<9x8x4xbf16, #tpu.memory_space<vmem>>, vector<1x8x4xbf16>
    %30 = vector.shape_cast %29 : vector<1x8x4xbf16> to vector<8x4xbf16>
    %31 = vector.extract_strided_slice %2 {offsets = [0, 20], sizes = [4, 288], strides = [1, 1]} : vector<4x342xbf16> to vector<4x288xbf16>
    %cst_20 = arith.constant dense<0.000000e+00> : vector<8x288xf32>
    %32 = tpu.matmul %30, %31, %cst_20 {dimension_numbers = #tpu.dot_dimension_numbers<[1], [0], [0], [1], [0, 0, 1, 1], [], []>} : vector<8x4xbf16>, vector<4x288xbf16>, vector<8x288xf32> -> vector<8x288xf32>
    %33 = arith.addf %28, %32 : vector<8x288xf32>
    %c6 = arith.constant 6 : index
    %c0_21 = arith.constant 0 : index
    %c0_22 = arith.constant 0 : index
    %34 = vector.load %arg2[%c6, %c0_21, %c0_22] : memref<9x8x4xbf16, #tpu.memory_space<vmem>>, vector<1x8x4xbf16>
    %35 = vector.shape_cast %34 : vector<1x8x4xbf16> to vector<8x4xbf16>
    %36 = vector.extract_strided_slice %2 {offsets = [0, 36], sizes = [4, 288], strides = [1, 1]} : vector<4x342xbf16> to vector<4x288xbf16>
    %cst_23 = arith.constant dense<0.000000e+00> : vector<8x288xf32>
    %37 = tpu.matmul %35, %36, %cst_23 {dimension_numbers = #tpu.dot_dimension_numbers<[1], [0], [0], [1], [0, 0, 1, 1], [], []>} : vector<8x4xbf16>, vector<4x288xbf16>, vector<8x288xf32> -> vector<8x288xf32>
    %38 = arith.addf %33, %37 : vector<8x288xf32>
    %c7 = arith.constant 7 : index
    %c0_24 = arith.constant 0 : index
    %c0_25 = arith.constant 0 : index
    %39 = vector.load %arg2[%c7, %c0_24, %c0_25] : memref<9x8x4xbf16, #tpu.memory_space<vmem>>, vector<1x8x4xbf16>
    %40 = vector.shape_cast %39 : vector<1x8x4xbf16> to vector<8x4xbf16>
    %41 = vector.extract_strided_slice %2 {offsets = [0, 37], sizes = [4, 288], strides = [1, 1]} : vector<4x342xbf16> to vector<4x288xbf16>
    %cst_26 = arith.constant dense<0.000000e+00> : vector<8x288xf32>
    %42 = tpu.matmul %40, %41, %cst_26 {dimension_numbers = #tpu.dot_dimension_numbers<[1], [0], [0], [1], [0, 0, 1, 1], [], []>} : vector<8x4xbf16>, vector<4x288xbf16>, vector<8x288xf32> -> vector<8x288xf32>
    %43 = arith.addf %38, %42 : vector<8x288xf32>
    %c8 = arith.constant 8 : index
    %c0_27 = arith.constant 0 : index
    %c0_28 = arith.constant 0 : index
    %44 = vector.load %arg2[%c8, %c0_27, %c0_28] : memref<9x8x4xbf16, #tpu.memory_space<vmem>>, vector<1x8x4xbf16>
    %45 = vector.shape_cast %44 : vector<1x8x4xbf16> to vector<8x4xbf16>
    %46 = vector.extract_strided_slice %2 {offsets = [0, 38], sizes = [4, 288], strides = [1, 1]} : vector<4x342xbf16> to vector<4x288xbf16>
    %cst_29 = arith.constant dense<0.000000e+00> : vector<8x288xf32>
    %47 = tpu.matmul %45, %46, %cst_29 {dimension_numbers = #tpu.dot_dimension_numbers<[1], [0], [0], [1], [0, 0, 1, 1], [], []>} : vector<8x4xbf16>, vector<4x288xbf16>, vector<8x288xf32> -> vector<8x288xf32>
    %48 = arith.addf %43, %47 : vector<8x288xf32>
    %c0_30 = arith.constant 0 : index
    %c0_31 = arith.constant 0 : index
    %49 = vector.load %arg3[%c0_30, %c0_31] : memref<8x1xf32, #tpu.memory_space<vmem>>, vector<8x1xf32>
    %50 = vector.broadcast %49 : vector<8x1xf32> to vector<8x288xf32>
    %51 = arith.mulf %48, %50 : vector<8x288xf32>
    %c0_32 = arith.constant 0 : index
    %c0_33 = arith.constant 0 : index
    %52 = vector.load %arg4[%c0_32, %c0_33] : memref<8x1xf32, #tpu.memory_space<vmem>>, vector<8x1xf32>
    %53 = vector.broadcast %52 : vector<8x1xf32> to vector<8x288xf32>
    %54 = arith.addf %51, %53 : vector<8x288xf32>
    %cst_34 = arith.constant 0.000000e+00 : f32
    %55 = vector.broadcast %cst_34 : f32 to vector<8x288xf32>
    %56 = arith.maximumf %54, %55 : vector<8x288xf32>
    %57 = arith.truncf %56 : vector<8x288xf32> to vector<8x288xbf16>
    %cst_35 = arith.constant 0.000000e+00 : bf16
    %58 = vector.broadcast %cst_35 : bf16 to vector<8x342xbf16>
    %c0_36 = arith.constant 0 : index
    %c0_37 = arith.constant 0 : index
    %59 = vector.load %arg9[%c0_36, %c0_37] : memref<8x342xbf16, #tpu.memory_space<vmem>>, vector<8x342xbf16>
    tpu.vector_store %arg9[%c0_36, %c0_37], %58 {strides = array<i32>} : memref<8x342xbf16, #tpu.memory_space<vmem>>, vector<8x342xbf16>,
    %60 = vector.extract_strided_slice %57 {offsets = [0, 0], sizes = [8, 16], strides = [1, 1]} : vector<8x288xbf16> to vector<8x16xbf16>
    %c0_38 = arith.constant 0 : index
    %c19 = arith.constant 19 : index
    %61 = vector.load %arg9[%c0_38, %c19] : memref<8x342xbf16, #tpu.memory_space<vmem>>, vector<8x16xbf16>
    tpu.vector_store %arg9[%c0_38, %c19], %60 {strides = array<i32>} : memref<8x342xbf16, #tpu.memory_space<vmem>>, vector<8x16xbf16>,
    %62 = vector.extract_strided_slice %57 {offsets = [0, 18], sizes = [8, 16], strides = [1, 1]} : vector<8x288xbf16> to vector<8x16xbf16>
    %c0_39 = arith.constant 0 : index
    %c37 = arith.constant 37 : index
    %63 = vector.load %arg9[%c0_39, %c37] : memref<8x342xbf16, #tpu.memory_space<vmem>>, vector<8x16xbf16>
    tpu.vector_store %arg9[%c0_39, %c37], %62 {strides = array<i32>} : memref<8x342xbf16, #tpu.memory_space<vmem>>, vector<8x16xbf16>,
    %64 = vector.extract_strided_slice %57 {offsets = [0, 36], sizes = [8, 16], strides = [1, 1]} : vector<8x288xbf16> to vector<8x16xbf16>
    %c0_40 = arith.constant 0 : index
    %c55 = arith.constant 55 : index
    %65 = vector.load %arg9[%c0_40, %c55] : memref<8x342xbf16, #tpu.memory_space<vmem>>, vector<8x16xbf16>
    tpu.vector_store %arg9[%c0_40, %c55], %64 {strides = array<i32>} : memref<8x342xbf16, #tpu.memory_space<vmem>>, vector<8x16xbf16>,
    %66 = vector.extract_strided_slice %57 {offsets = [0, 54], sizes = [8, 16], strides = [1, 1]} : vector<8x288xbf16> to vector<8x16xbf16>
    %c0_41 = arith.constant 0 : index
    %c73 = arith.constant 73 : index
    %67 = vector.load %arg9[%c0_41, %c73] : memref<8x342xbf16, #tpu.memory_space<vmem>>, vector<8x16xbf16>
    tpu.vector_store %arg9[%c0_41, %c73], %66 {strides = array<i32>} : memref<8x342xbf16, #tpu.memory_space<vmem>>, vector<8x16xbf16>,
    %68 = vector.extract_strided_slice %57 {offsets = [0, 72], sizes = [8, 16], strides = [1, 1]} : vector<8x288xbf16> to vector<8x16xbf16>
    %c0_42 = arith.constant 0 : index
    %c91 = arith.constant 91 : index
    %69 = vector.load %arg9[%c0_42, %c91] : memref<8x342xbf16, #tpu.memory_space<vmem>>, vector<8x16xbf16>
    tpu.vector_store %arg9[%c0_42, %c91], %68 {strides = array<i32>} : memref<8x342xbf16, #tpu.memory_space<vmem>>, vector<8x16xbf16>,
    %70 = vector.extract_strided_slice %57 {offsets = [0, 90], sizes = [8, 16], strides = [1, 1]} : vector<8x288xbf16> to vector<8x16xbf16>
    %c0_43 = arith.constant 0 : index
    %c109 = arith.constant 109 : index
    %71 = vector.load %arg9[%c0_43, %c109] : memref<8x342xbf16, #tpu.memory_space<vmem>>, vector<8x16xbf16>
    tpu.vector_store %arg9[%c0_43, %c109], %70 {strides = array<i32>} : memref<8x342xbf16, #tpu.memory_space<vmem>>, vector<8x16xbf16>,
    %72 = vector.extract_strided_slice %57 {offsets = [0, 108], sizes = [8, 16], strides = [1, 1]} : vector<8x288xbf16> to vector<8x16xbf16>
    %c0_44 = arith.constant 0 : index
    %c127 = arith.constant 127 : index
    %73 = vector.load %arg9[%c0_44, %c127] : memref<8x342xbf16, #tpu.memory_space<vmem>>, vector<8x16xbf16>
    tpu.vector_store %arg9[%c0_44, %c127], %72 {strides = array<i32>} : memref<8x342xbf16, #tpu.memory_space<vmem>>, vector<8x16xbf16>,
    %74 = vector.extract_strided_slice %57 {offsets = [0, 126], sizes = [8, 16], strides = [1, 1]} : vector<8x288xbf16> to vector<8x16xbf16>
    %c0_45 = arith.constant 0 : index
    %c145 = arith.constant 145 : index
    %75 = vector.load %arg9[%c0_45, %c145] : memref<8x342xbf16, #tpu.memory_space<vmem>>, vector<8x16xbf16>
    tpu.vector_store %arg9[%c0_45, %c145], %74 {strides = array<i32>} : memref<8x342xbf16, #tpu.memory_space<vmem>>, vector<8x16xbf16>,
    %76 = vector.extract_strided_slice %57 {offsets = [0, 144], sizes = [8, 16], strides = [1, 1]} : vector<8x288xbf16> to vector<8x16xbf16>
    %c0_46 = arith.constant 0 : index
    %c163 = arith.constant 163 : index
    %77 = vector.load %arg9[%c0_46, %c163] : memref<8x342xbf16, #tpu.memory_space<vmem>>, vector<8x16xbf16>
    tpu.vector_store %arg9[%c0_46, %c163], %76 {strides = array<i32>} : memref<8x342xbf16, #tpu.memory_space<vmem>>, vector<8x16xbf16>,
    %78 = vector.extract_strided_slice %57 {offsets = [0, 162], sizes = [8, 16], strides = [1, 1]} : vector<8x288xbf16> to vector<8x16xbf16>
    %c0_47 = arith.constant 0 : index
    %c181 = arith.constant 181 : index
    %79 = vector.load %arg9[%c0_47, %c181] : memref<8x342xbf16, #tpu.memory_space<vmem>>, vector<8x16xbf16>
    tpu.vector_store %arg9[%c0_47, %c181], %78 {strides = array<i32>} : memref<8x342xbf16, #tpu.memory_space<vmem>>, vector<8x16xbf16>,
    %80 = vector.extract_strided_slice %57 {offsets = [0, 180], sizes = [8, 16], strides = [1, 1]} : vector<8x288xbf16> to vector<8x16xbf16>
    %c0_48 = arith.constant 0 : index
    %c199 = arith.constant 199 : index
    %81 = vector.load %arg9[%c0_48, %c199] : memref<8x342xbf16, #tpu.memory_space<vmem>>, vector<8x16xbf16>
    tpu.vector_store %arg9[%c0_48, %c199], %80 {strides = array<i32>} : memref<8x342xbf16, #tpu.memory_space<vmem>>, vector<8x16xbf16>,
    %82 = vector.extract_strided_slice %57 {offsets = [0, 198], sizes = [8, 16], strides = [1, 1]} : vector<8x288xbf16> to vector<8x16xbf16>
    %c0_49 = arith.constant 0 : index
    %c217 = arith.constant 217 : index
    %83 = vector.load %arg9[%c0_49, %c217] : memref<8x342xbf16, #tpu.memory_space<vmem>>, vector<8x16xbf16>
    tpu.vector_store %arg9[%c0_49, %c217], %82 {strides = array<i32>} : memref<8x342xbf16, #tpu.memory_space<vmem>>, vector<8x16xbf16>,
    %84 = vector.extract_strided_slice %57 {offsets = [0, 216], sizes = [8, 16], strides = [1, 1]} : vector<8x288xbf16> to vector<8x16xbf16>
    %c0_50 = arith.constant 0 : index
    %c235 = arith.constant 235 : index
    %85 = vector.load %arg9[%c0_50, %c235] : memref<8x342xbf16, #tpu.memory_space<vmem>>, vector<8x16xbf16>
    tpu.vector_store %arg9[%c0_50, %c235], %84 {strides = array<i32>} : memref<8x342xbf16, #tpu.memory_space<vmem>>, vector<8x16xbf16>,
    %86 = vector.extract_strided_slice %57 {offsets = [0, 234], sizes = [8, 16], strides = [1, 1]} : vector<8x288xbf16> to vector<8x16xbf16>
    %c0_51 = arith.constant 0 : index
    %c253 = arith.constant 253 : index
    %87 = vector.load %arg9[%c0_51, %c253] : memref<8x342xbf16, #tpu.memory_space<vmem>>, vector<8x16xbf16>
    tpu.vector_store %arg9[%c0_51, %c253], %86 {strides = array<i32>} : memref<8x342xbf16, #tpu.memory_space<vmem>>, vector<8x16xbf16>,
    %88 = vector.extract_strided_slice %57 {offsets = [0, 252], sizes = [8, 16], strides = [1, 1]} : vector<8x288xbf16> to vector<8x16xbf16>
    %c0_52 = arith.constant 0 : index
    %c271 = arith.constant 271 : index
    %89 = vector.load %arg9[%c0_52, %c271] : memref<8x342xbf16, #tpu.memory_space<vmem>>, vector<8x16xbf16>
    tpu.vector_store %arg9[%c0_52, %c271], %88 {strides = array<i32>} : memref<8x342xbf16, #tpu.memory_space<vmem>>, vector<8x16xbf16>,
    %90 = vector.extract_strided_slice %57 {offsets = [0, 270], sizes = [8, 16], strides = [1, 1]} : vector<8x288xbf16> to vector<8x16xbf16>
    %c0_53 = arith.constant 0 : index
    %c289 = arith.constant 289 : index
    %91 = vector.load %arg9[%c0_53, %c289] : memref<8x342xbf16, #tpu.memory_space<vmem>>, vector<8x16xbf16>
    tpu.vector_store %arg9[%c0_53, %c289], %90 {strides = array<i32>} : memref<8x342xbf16, #tpu.memory_space<vmem>>, vector<8x16xbf16>,
    %c0_54 = arith.constant 0 : index
    %c0_55 = arith.constant 0 : index
    %92 = vector.load %arg9[%c0_54, %c0_55] : memref<8x342xbf16, #tpu.memory_space<vmem>>, vector<8x342xbf16>
    %cst_56 = arith.constant 0.000000e+00 : f32
    %93 = vector.broadcast %cst_56 : f32 to vector<8x288xf32>
    %c0_57 = arith.constant 0 : index
    %c0_58 = arith.constant 0 : index
    %c0_59 = arith.constant 0 : index
    %94 = vector.load %arg5[%c0_57, %c0_58, %c0_59] : memref<9x8x8xbf16, #tpu.memory_space<vmem>>, vector<1x8x8xbf16>
    %95 = vector.shape_cast %94 : vector<1x8x8xbf16> to vector<8x8xbf16>
    %96 = vector.extract_strided_slice %92 {offsets = [0, 0], sizes = [8, 288], strides = [1, 1]} : vector<8x342xbf16> to vector<8x288xbf16>
    %cst_60 = arith.constant dense<0.000000e+00> : vector<8x288xf32>
    %97 = tpu.matmul %95, %96, %cst_60 {dimension_numbers = #tpu.dot_dimension_numbers<[1], [0], [0], [1], [0, 0, 1, 1], [], []>} : vector<8x8xbf16>, vector<8x288xbf16>, vector<8x288xf32> -> vector<8x288xf32>
    %98 = arith.addf %93, %97 : vector<8x288xf32>
    %c1_61 = arith.constant 1 : index
    %c0_62 = arith.constant 0 : index
    %c0_63 = arith.constant 0 : index
    %99 = vector.load %arg5[%c1_61, %c0_62, %c0_63] : memref<9x8x8xbf16, #tpu.memory_space<vmem>>, vector<1x8x8xbf16>
    %100 = vector.shape_cast %99 : vector<1x8x8xbf16> to vector<8x8xbf16>
    %101 = vector.extract_strided_slice %92 {offsets = [0, 1], sizes = [8, 288], strides = [1, 1]} : vector<8x342xbf16> to vector<8x288xbf16>
    %cst_64 = arith.constant dense<0.000000e+00> : vector<8x288xf32>
    %102 = tpu.matmul %100, %101, %cst_64 {dimension_numbers = #tpu.dot_dimension_numbers<[1], [0], [0], [1], [0, 0, 1, 1], [], []>} : vector<8x8xbf16>, vector<8x288xbf16>, vector<8x288xf32> -> vector<8x288xf32>
    %103 = arith.addf %98, %102 : vector<8x288xf32>
    %c2_65 = arith.constant 2 : index
    %c0_66 = arith.constant 0 : index
    %c0_67 = arith.constant 0 : index
    %104 = vector.load %arg5[%c2_65, %c0_66, %c0_67] : memref<9x8x8xbf16, #tpu.memory_space<vmem>>, vector<1x8x8xbf16>
    %105 = vector.shape_cast %104 : vector<1x8x8xbf16> to vector<8x8xbf16>
    %106 = vector.extract_strided_slice %92 {offsets = [0, 2], sizes = [8, 288], strides = [1, 1]} : vector<8x342xbf16> to vector<8x288xbf16>
    %cst_68 = arith.constant dense<0.000000e+00> : vector<8x288xf32>
    %107 = tpu.matmul %105, %106, %cst_68 {dimension_numbers = #tpu.dot_dimension_numbers<[1], [0], [0], [1], [0, 0, 1, 1], [], []>} : vector<8x8xbf16>, vector<8x288xbf16>, vector<8x288xf32> -> vector<8x288xf32>
    %108 = arith.addf %103, %107 : vector<8x288xf32>
    %c3_69 = arith.constant 3 : index
    %c0_70 = arith.constant 0 : index
    %c0_71 = arith.constant 0 : index
    %109 = vector.load %arg5[%c3_69, %c0_70, %c0_71] : memref<9x8x8xbf16, #tpu.memory_space<vmem>>, vector<1x8x8xbf16>
    %110 = vector.shape_cast %109 : vector<1x8x8xbf16> to vector<8x8xbf16>
    %111 = vector.extract_strided_slice %92 {offsets = [0, 18], sizes = [8, 288], strides = [1, 1]} : vector<8x342xbf16> to vector<8x288xbf16>
    %cst_72 = arith.constant dense<0.000000e+00> : vector<8x288xf32>
    %112 = tpu.matmul %110, %111, %cst_72 {dimension_numbers = #tpu.dot_dimension_numbers<[1], [0], [0], [1], [0, 0, 1, 1], [], []>} : vector<8x8xbf16>, vector<8x288xbf16>, vector<8x288xf32> -> vector<8x288xf32>
    %113 = arith.addf %108, %112 : vector<8x288xf32>
    %c4_73 = arith.constant 4 : index
    %c0_74 = arith.constant 0 : index
    %c0_75 = arith.constant 0 : index
    %114 = vector.load %arg5[%c4_73, %c0_74, %c0_75] : memref<9x8x8xbf16, #tpu.memory_space<vmem>>, vector<1x8x8xbf16>
    %115 = vector.shape_cast %114 : vector<1x8x8xbf16> to vector<8x8xbf16>
    %116 = vector.extract_strided_slice %92 {offsets = [0, 19], sizes = [8, 288], strides = [1, 1]} : vector<8x342xbf16> to vector<8x288xbf16>
    %cst_76 = arith.constant dense<0.000000e+00> : vector<8x288xf32>
    %117 = tpu.matmul %115, %116, %cst_76 {dimension_numbers = #tpu.dot_dimension_numbers<[1], [0], [0], [1], [0, 0, 1, 1], [], []>} : vector<8x8xbf16>, vector<8x288xbf16>, vector<8x288xf32> -> vector<8x288xf32>
    %118 = arith.addf %113, %117 : vector<8x288xf32>
    %c5_77 = arith.constant 5 : index
    %c0_78 = arith.constant 0 : index
    %c0_79 = arith.constant 0 : index
    %119 = vector.load %arg5[%c5_77, %c0_78, %c0_79] : memref<9x8x8xbf16, #tpu.memory_space<vmem>>, vector<1x8x8xbf16>
    %120 = vector.shape_cast %119 : vector<1x8x8xbf16> to vector<8x8xbf16>
    %121 = vector.extract_strided_slice %92 {offsets = [0, 20], sizes = [8, 288], strides = [1, 1]} : vector<8x342xbf16> to vector<8x288xbf16>
    %cst_80 = arith.constant dense<0.000000e+00> : vector<8x288xf32>
    %122 = tpu.matmul %120, %121, %cst_80 {dimension_numbers = #tpu.dot_dimension_numbers<[1], [0], [0], [1], [0, 0, 1, 1], [], []>} : vector<8x8xbf16>, vector<8x288xbf16>, vector<8x288xf32> -> vector<8x288xf32>
    %123 = arith.addf %118, %122 : vector<8x288xf32>
    %c6_81 = arith.constant 6 : index
    %c0_82 = arith.constant 0 : index
    %c0_83 = arith.constant 0 : index
    %124 = vector.load %arg5[%c6_81, %c0_82, %c0_83] : memref<9x8x8xbf16, #tpu.memory_space<vmem>>, vector<1x8x8xbf16>
    %125 = vector.shape_cast %124 : vector<1x8x8xbf16> to vector<8x8xbf16>
    %126 = vector.extract_strided_slice %92 {offsets = [0, 36], sizes = [8, 288], strides = [1, 1]} : vector<8x342xbf16> to vector<8x288xbf16>
    %cst_84 = arith.constant dense<0.000000e+00> : vector<8x288xf32>
    %127 = tpu.matmul %125, %126, %cst_84 {dimension_numbers = #tpu.dot_dimension_numbers<[1], [0], [0], [1], [0, 0, 1, 1], [], []>} : vector<8x8xbf16>, vector<8x288xbf16>, vector<8x288xf32> -> vector<8x288xf32>
    %128 = arith.addf %123, %127 : vector<8x288xf32>
    %c7_85 = arith.constant 7 : index
    %c0_86 = arith.constant 0 : index
    %c0_87 = arith.constant 0 : index
    %129 = vector.load %arg5[%c7_85, %c0_86, %c0_87] : memref<9x8x8xbf16, #tpu.memory_space<vmem>>, vector<1x8x8xbf16>
    %130 = vector.shape_cast %129 : vector<1x8x8xbf16> to vector<8x8xbf16>
    %131 = vector.extract_strided_slice %92 {offsets = [0, 37], sizes = [8, 288], strides = [1, 1]} : vector<8x342xbf16> to vector<8x288xbf16>
    %cst_88 = arith.constant dense<0.000000e+00> : vector<8x288xf32>
    %132 = tpu.matmul %130, %131, %cst_88 {dimension_numbers = #tpu.dot_dimension_numbers<[1], [0], [0], [1], [0, 0, 1, 1], [], []>} : vector<8x8xbf16>, vector<8x288xbf16>, vector<8x288xf32> -> vector<8x288xf32>
    %133 = arith.addf %128, %132 : vector<8x288xf32>
    %c8_89 = arith.constant 8 : index
    %c0_90 = arith.constant 0 : index
    %c0_91 = arith.constant 0 : index
    %134 = vector.load %arg5[%c8_89, %c0_90, %c0_91] : memref<9x8x8xbf16, #tpu.memory_space<vmem>>, vector<1x8x8xbf16>
    %135 = vector.shape_cast %134 : vector<1x8x8xbf16> to vector<8x8xbf16>
    %136 = vector.extract_strided_slice %92 {offsets = [0, 38], sizes = [8, 288], strides = [1, 1]} : vector<8x342xbf16> to vector<8x288xbf16>
    %cst_92 = arith.constant dense<0.000000e+00> : vector<8x288xf32>
    %137 = tpu.matmul %135, %136, %cst_92 {dimension_numbers = #tpu.dot_dimension_numbers<[1], [0], [0], [1], [0, 0, 1, 1], [], []>} : vector<8x8xbf16>, vector<8x288xbf16>, vector<8x288xf32> -> vector<8x288xf32>
    %138 = arith.addf %133, %137 : vector<8x288xf32>
    %c0_93 = arith.constant 0 : index
    %c0_94 = arith.constant 0 : index
    %139 = vector.load %arg6[%c0_93, %c0_94] : memref<8x1xf32, #tpu.memory_space<vmem>>, vector<8x1xf32>
    %140 = vector.broadcast %139 : vector<8x1xf32> to vector<8x288xf32>
    %141 = arith.mulf %138, %140 : vector<8x288xf32>
    %c0_95 = arith.constant 0 : index
    %c0_96 = arith.constant 0 : index
    %142 = vector.load %arg7[%c0_95, %c0_96] : memref<8x1xf32, #tpu.memory_space<vmem>>, vector<8x1xf32>
    %143 = vector.broadcast %142 : vector<8x1xf32> to vector<8x288xf32>
    %144 = arith.addf %141, %143 : vector<8x288xf32>
    %cst_97 = arith.constant 0.000000e+00 : f32
    %145 = vector.broadcast %cst_97 : f32 to vector<8x288xf32>
    %146 = arith.maximumf %144, %145 : vector<8x288xf32>
    %147 = vector.extract_strided_slice %146 {offsets = [0, 0], sizes = [8, 16], strides = [1, 1]} : vector<8x288xf32> to vector<8x16xf32>
    %c0_98 = arith.constant 0 : index
    %c0_99 = arith.constant 0 : index
    %c0_100 = arith.constant 0 : index
    %148 = vector.load %arg8[%c0_98, %c0_99, %c0_100] : memref<1x8x256xf32, #tpu.memory_space<vmem>>, vector<1x8x16xf32>
    %149 = vector.shape_cast %148 : vector<1x8x16xf32> to vector<8x16xf32>
    %150 = vector.shape_cast %147 : vector<8x16xf32> to vector<1x8x16xf32>
    tpu.vector_store %arg8[%c0_98, %c0_99, %c0_100], %150 {strides = array<i32>} : memref<1x8x256xf32, #tpu.memory_space<vmem>>, vector<1x8x16xf32>,
    %151 = vector.extract_strided_slice %146 {offsets = [0, 18], sizes = [8, 16], strides = [1, 1]} : vector<8x288xf32> to vector<8x16xf32>
    %c0_101 = arith.constant 0 : index
    %c0_102 = arith.constant 0 : index
    %c16 = arith.constant 16 : index
    %152 = vector.load %arg8[%c0_101, %c0_102, %c16] : memref<1x8x256xf32, #tpu.memory_space<vmem>>, vector<1x8x16xf32>
    %153 = vector.shape_cast %152 : vector<1x8x16xf32> to vector<8x16xf32>
    %154 = vector.shape_cast %151 : vector<8x16xf32> to vector<1x8x16xf32>
    tpu.vector_store %arg8[%c0_101, %c0_102, %c16], %154 {strides = array<i32>} : memref<1x8x256xf32, #tpu.memory_space<vmem>>, vector<1x8x16xf32>,
    %155 = vector.extract_strided_slice %146 {offsets = [0, 36], sizes = [8, 16], strides = [1, 1]} : vector<8x288xf32> to vector<8x16xf32>
    %c0_103 = arith.constant 0 : index
    %c0_104 = arith.constant 0 : index
    %c32 = arith.constant 32 : index
    %156 = vector.load %arg8[%c0_103, %c0_104, %c32] : memref<1x8x256xf32, #tpu.memory_space<vmem>>, vector<1x8x16xf32>
    %157 = vector.shape_cast %156 : vector<1x8x16xf32> to vector<8x16xf32>
    %158 = vector.shape_cast %155 : vector<8x16xf32> to vector<1x8x16xf32>
    tpu.vector_store %arg8[%c0_103, %c0_104, %c32], %158 {strides = array<i32>} : memref<1x8x256xf32, #tpu.memory_space<vmem>>, vector<1x8x16xf32>,
    %159 = vector.extract_strided_slice %146 {offsets = [0, 54], sizes = [8, 16], strides = [1, 1]} : vector<8x288xf32> to vector<8x16xf32>
    %c0_105 = arith.constant 0 : index
    %c0_106 = arith.constant 0 : index
    %c48 = arith.constant 48 : index
    %160 = vector.load %arg8[%c0_105, %c0_106, %c48] : memref<1x8x256xf32, #tpu.memory_space<vmem>>, vector<1x8x16xf32>
    %161 = vector.shape_cast %160 : vector<1x8x16xf32> to vector<8x16xf32>
    %162 = vector.shape_cast %159 : vector<8x16xf32> to vector<1x8x16xf32>
    tpu.vector_store %arg8[%c0_105, %c0_106, %c48], %162 {strides = array<i32>} : memref<1x8x256xf32, #tpu.memory_space<vmem>>, vector<1x8x16xf32>,
    %163 = vector.extract_strided_slice %146 {offsets = [0, 72], sizes = [8, 16], strides = [1, 1]} : vector<8x288xf32> to vector<8x16xf32>
    %c0_107 = arith.constant 0 : index
    %c0_108 = arith.constant 0 : index
    %c64 = arith.constant 64 : index
    %164 = vector.load %arg8[%c0_107, %c0_108, %c64] : memref<1x8x256xf32, #tpu.memory_space<vmem>>, vector<1x8x16xf32>
    %165 = vector.shape_cast %164 : vector<1x8x16xf32> to vector<8x16xf32>
    %166 = vector.shape_cast %163 : vector<8x16xf32> to vector<1x8x16xf32>
    tpu.vector_store %arg8[%c0_107, %c0_108, %c64], %166 {strides = array<i32>} : memref<1x8x256xf32, #tpu.memory_space<vmem>>, vector<1x8x16xf32>,
    %167 = vector.extract_strided_slice %146 {offsets = [0, 90], sizes = [8, 16], strides = [1, 1]} : vector<8x288xf32> to vector<8x16xf32>
    %c0_109 = arith.constant 0 : index
    %c0_110 = arith.constant 0 : index
    %c80 = arith.constant 80 : index
    %168 = vector.load %arg8[%c0_109, %c0_110, %c80] : memref<1x8x256xf32, #tpu.memory_space<vmem>>, vector<1x8x16xf32>
    %169 = vector.shape_cast %168 : vector<1x8x16xf32> to vector<8x16xf32>
    %170 = vector.shape_cast %167 : vector<8x16xf32> to vector<1x8x16xf32>
    tpu.vector_store %arg8[%c0_109, %c0_110, %c80], %170 {strides = array<i32>} : memref<1x8x256xf32, #tpu.memory_space<vmem>>, vector<1x8x16xf32>,
    %171 = vector.extract_strided_slice %146 {offsets = [0, 108], sizes = [8, 16], strides = [1, 1]} : vector<8x288xf32> to vector<8x16xf32>
    %c0_111 = arith.constant 0 : index
    %c0_112 = arith.constant 0 : index
    %c96 = arith.constant 96 : index
    %172 = vector.load %arg8[%c0_111, %c0_112, %c96] : memref<1x8x256xf32, #tpu.memory_space<vmem>>, vector<1x8x16xf32>
    %173 = vector.shape_cast %172 : vector<1x8x16xf32> to vector<8x16xf32>
    %174 = vector.shape_cast %171 : vector<8x16xf32> to vector<1x8x16xf32>
    tpu.vector_store %arg8[%c0_111, %c0_112, %c96], %174 {strides = array<i32>} : memref<1x8x256xf32, #tpu.memory_space<vmem>>, vector<1x8x16xf32>,
    %175 = vector.extract_strided_slice %146 {offsets = [0, 126], sizes = [8, 16], strides = [1, 1]} : vector<8x288xf32> to vector<8x16xf32>
    %c0_113 = arith.constant 0 : index
    %c0_114 = arith.constant 0 : index
    %c112 = arith.constant 112 : index
    %176 = vector.load %arg8[%c0_113, %c0_114, %c112] : memref<1x8x256xf32, #tpu.memory_space<vmem>>, vector<1x8x16xf32>
    %177 = vector.shape_cast %176 : vector<1x8x16xf32> to vector<8x16xf32>
    %178 = vector.shape_cast %175 : vector<8x16xf32> to vector<1x8x16xf32>
    tpu.vector_store %arg8[%c0_113, %c0_114, %c112], %178 {strides = array<i32>} : memref<1x8x256xf32, #tpu.memory_space<vmem>>, vector<1x8x16xf32>,
    %179 = vector.extract_strided_slice %146 {offsets = [0, 144], sizes = [8, 16], strides = [1, 1]} : vector<8x288xf32> to vector<8x16xf32>
    %c0_115 = arith.constant 0 : index
    %c0_116 = arith.constant 0 : index
    %c128 = arith.constant 128 : index
    %180 = vector.load %arg8[%c0_115, %c0_116, %c128] : memref<1x8x256xf32, #tpu.memory_space<vmem>>, vector<1x8x16xf32>
    %181 = vector.shape_cast %180 : vector<1x8x16xf32> to vector<8x16xf32>
    %182 = vector.shape_cast %179 : vector<8x16xf32> to vector<1x8x16xf32>
    tpu.vector_store %arg8[%c0_115, %c0_116, %c128], %182 {strides = array<i32>} : memref<1x8x256xf32, #tpu.memory_space<vmem>>, vector<1x8x16xf32>,
    %183 = vector.extract_strided_slice %146 {offsets = [0, 162], sizes = [8, 16], strides = [1, 1]} : vector<8x288xf32> to vector<8x16xf32>
    %c0_117 = arith.constant 0 : index
    %c0_118 = arith.constant 0 : index
    %c144 = arith.constant 144 : index
    %184 = vector.load %arg8[%c0_117, %c0_118, %c144] : memref<1x8x256xf32, #tpu.memory_space<vmem>>, vector<1x8x16xf32>
    %185 = vector.shape_cast %184 : vector<1x8x16xf32> to vector<8x16xf32>
    %186 = vector.shape_cast %183 : vector<8x16xf32> to vector<1x8x16xf32>
    tpu.vector_store %arg8[%c0_117, %c0_118, %c144], %186 {strides = array<i32>} : memref<1x8x256xf32, #tpu.memory_space<vmem>>, vector<1x8x16xf32>,
    %187 = vector.extract_strided_slice %146 {offsets = [0, 180], sizes = [8, 16], strides = [1, 1]} : vector<8x288xf32> to vector<8x16xf32>
    %c0_119 = arith.constant 0 : index
    %c0_120 = arith.constant 0 : index
    %c160 = arith.constant 160 : index
    %188 = vector.load %arg8[%c0_119, %c0_120, %c160] : memref<1x8x256xf32, #tpu.memory_space<vmem>>, vector<1x8x16xf32>
    %189 = vector.shape_cast %188 : vector<1x8x16xf32> to vector<8x16xf32>
    %190 = vector.shape_cast %187 : vector<8x16xf32> to vector<1x8x16xf32>
    tpu.vector_store %arg8[%c0_119, %c0_120, %c160], %190 {strides = array<i32>} : memref<1x8x256xf32, #tpu.memory_space<vmem>>, vector<1x8x16xf32>,
    %191 = vector.extract_strided_slice %146 {offsets = [0, 198], sizes = [8, 16], strides = [1, 1]} : vector<8x288xf32> to vector<8x16xf32>
    %c0_121 = arith.constant 0 : index
    %c0_122 = arith.constant 0 : index
    %c176 = arith.constant 176 : index
    %192 = vector.load %arg8[%c0_121, %c0_122, %c176] : memref<1x8x256xf32, #tpu.memory_space<vmem>>, vector<1x8x16xf32>
    %193 = vector.shape_cast %192 : vector<1x8x16xf32> to vector<8x16xf32>
    %194 = vector.shape_cast %191 : vector<8x16xf32> to vector<1x8x16xf32>
    tpu.vector_store %arg8[%c0_121, %c0_122, %c176], %194 {strides = array<i32>} : memref<1x8x256xf32, #tpu.memory_space<vmem>>, vector<1x8x16xf32>,
    %195 = vector.extract_strided_slice %146 {offsets = [0, 216], sizes = [8, 16], strides = [1, 1]} : vector<8x288xf32> to vector<8x16xf32>
    %c0_123 = arith.constant 0 : index
    %c0_124 = arith.constant 0 : index
    %c192 = arith.constant 192 : index
    %196 = vector.load %arg8[%c0_123, %c0_124, %c192] : memref<1x8x256xf32, #tpu.memory_space<vmem>>, vector<1x8x16xf32>
    %197 = vector.shape_cast %196 : vector<1x8x16xf32> to vector<8x16xf32>
    %198 = vector.shape_cast %195 : vector<8x16xf32> to vector<1x8x16xf32>
    tpu.vector_store %arg8[%c0_123, %c0_124, %c192], %198 {strides = array<i32>} : memref<1x8x256xf32, #tpu.memory_space<vmem>>, vector<1x8x16xf32>,
    %199 = vector.extract_strided_slice %146 {offsets = [0, 234], sizes = [8, 16], strides = [1, 1]} : vector<8x288xf32> to vector<8x16xf32>
    %c0_125 = arith.constant 0 : index
    %c0_126 = arith.constant 0 : index
    %c208 = arith.constant 208 : index
    %200 = vector.load %arg8[%c0_125, %c0_126, %c208] : memref<1x8x256xf32, #tpu.memory_space<vmem>>, vector<1x8x16xf32>
    %201 = vector.shape_cast %200 : vector<1x8x16xf32> to vector<8x16xf32>
    %202 = vector.shape_cast %199 : vector<8x16xf32> to vector<1x8x16xf32>
    tpu.vector_store %arg8[%c0_125, %c0_126, %c208], %202 {strides = array<i32>} : memref<1x8x256xf32, #tpu.memory_space<vmem>>, vector<1x8x16xf32>,
    %203 = vector.extract_strided_slice %146 {offsets = [0, 252], sizes = [8, 16], strides = [1, 1]} : vector<8x288xf32> to vector<8x16xf32>
    %c0_127 = arith.constant 0 : index
    %c0_128 = arith.constant 0 : index
    %c224 = arith.constant 224 : index
    %204 = vector.load %arg8[%c0_127, %c0_128, %c224] : memref<1x8x256xf32, #tpu.memory_space<vmem>>, vector<1x8x16xf32>
    %205 = vector.shape_cast %204 : vector<1x8x16xf32> to vector<8x16xf32>
    %206 = vector.shape_cast %203 : vector<8x16xf32> to vector<1x8x16xf32>
    tpu.vector_store %arg8[%c0_127, %c0_128, %c224], %206 {strides = array<i32>} : memref<1x8x256xf32, #tpu.memory_space<vmem>>, vector<1x8x16xf32>,
    %207 = vector.extract_strided_slice %146 {offsets = [0, 270], sizes = [8, 16], strides = [1, 1]} : vector<8x288xf32> to vector<8x16xf32>
    %c0_129 = arith.constant 0 : index
    %c0_130 = arith.constant 0 : index
    %c240 = arith.constant 240 : index
    %208 = vector.load %arg8[%c0_129, %c0_130, %c240] : memref<1x8x256xf32, #tpu.memory_space<vmem>>, vector<1x8x16xf32>
    %209 = vector.shape_cast %208 : vector<1x8x16xf32> to vector<8x16xf32>
    %210 = vector.shape_cast %207 : vector<8x16xf32> to vector<1x8x16xf32>
    tpu.vector_store %arg8[%c0_129, %c0_130, %c240], %210 {strides = array<i32>} : memref<1x8x256xf32, #tpu.memory_space<vmem>>, vector<1x8x16xf32>,
    return
  }
  func.func @transform_0(%arg0: i32) -> (i32, i32, i32) {
    %c0_i32 = arith.constant 0 : i32
    %c0_i32_0 = arith.constant 0 : i32
    %c0_i32_1 = arith.constant 0 : i32
    return %arg0, %c0_i32, %c0_i32_0 : i32, i32, i32
  }
  func.func @transform_1(%arg0: i32) -> (i32, i32, i32) {
    %c0_i32 = arith.constant 0 : i32
    %c0_i32_0 = arith.constant 0 : i32
    %c0_i32_1 = arith.constant 0 : i32
    %c0_i32_2 = arith.constant 0 : i32
    return %c0_i32, %c0_i32_0, %c0_i32_1 : i32, i32, i32
  }
  func.func @transform_2(%arg0: i32) -> (i32, i32) {
    %c0_i32 = arith.constant 0 : i32
    %c0_i32_0 = arith.constant 0 : i32
    %c0_i32_1 = arith.constant 0 : i32
    return %c0_i32, %c0_i32_0 : i32, i32
  }
  func.func @transform_3(%arg0: i32) -> (i32, i32) {
    %c0_i32 = arith.constant 0 : i32
    %c0_i32_0 = arith.constant 0 : i32
    %c0_i32_1 = arith.constant 0 : i32
    return %c0_i32, %c0_i32_0 : i32, i32
  }
  func.func @transform_4(%arg0: i32) -> (i32, i32, i32) {
    %c0_i32 = arith.constant 0 : i32
    %c0_i32_0 = arith.constant 0 : i32
    %c0_i32_1 = arith.constant 0 : i32
    %c0_i32_2 = arith.constant 0 : i32
    return %c0_i32, %c0_i32_0, %c0_i32_1 : i32, i32, i32
  }
  func.func @transform_5(%arg0: i32) -> (i32, i32) {
    %c0_i32 = arith.constant 0 : i32
    %c0_i32_0 = arith.constant 0 : i32
    %c0_i32_1 = arith.constant 0 : i32
    return %c0_i32, %c0_i32_0 : i32, i32
  }
  func.func @transform_6(%arg0: i32) -> (i32, i32) {
    %c0_i32 = arith.constant 0 : i32
    %c0_i32_0 = arith.constant 0 : i32
    %c0_i32_1 = arith.constant 0 : i32
    return %c0_i32, %c0_i32_0 : i32, i32
  }
  func.func @transform_7(%arg0: i32) -> (i32, i32, i32) {
    %c0_i32 = arith.constant 0 : i32
    %c0_i32_0 = arith.constant 0 : i32
    %c0_i32_1 = arith.constant 0 : i32
    return %arg0, %c0_i32, %c0_i32_0 : i32, i32, i32
  }
}

</mosaic_0001>

<llo_original>
// kernel: double_conv.1
$region0: #{double_conv.1}
  #allocation0 [shape = 'u32[]', space=smem, size = 0x4, offset = 0x4, fixed_abs, tag = 'smem constant byte address 0x4 - core index']
  #allocation1 [shape = 'u32[144,128]{1,0:T(1,128)}', space=vmem, size = 0x12000, scoped, tag = 'internal scratch']
  #allocation2 [shape = 'bf16[8,342]{1,0:T(8,128)(2,1)}', space=vmem, size = 0x1800, scoped, tag = 'scratch operand']
  %s0 = inlined_call_operand.vmem [shape: f32[2,4,342], index: 0, kind: input, shape index: {}]
  %s1 = inlined_call_operand.vmem [shape: bf16[9,8,4], index: 1, kind: input, shape index: {}]
  %s2 = inlined_call_operand.vmem [shape: f32[8,1], index: 2, kind: input, shape index: {}]
  %s3 = inlined_call_operand.vmem [shape: f32[8,1], index: 3, kind: input, shape index: {}]
  %s4 = inlined_call_operand.vmem [shape: bf16[9,8,8], index: 4, kind: input, shape index: {}]
  %s5 = inlined_call_operand.vmem [shape: f32[8,1], index: 5, kind: input, shape index: {}]
  %s6 = inlined_call_operand.vmem [shape: f32[8,1], index: 6, kind: input, shape index: {}]
  %s7 = inlined_call_operand.vmem [shape: f32[2,8,256], index: 7, kind: output, shape index: {}]
  %s8 = sld [smem:[#allocation0]]
  $region61: #{double_conv.1} parent=0
    _
  %s10 = ssub.s32 1, %s8
  %s11 = scalar_select 0, %s10, %s8
  loop: start=0, step=1, limit=4
  $region2: #{double_conv.1} parent=0 // loop_pre_header
    _
  $region3: #{double_conv.1} parent=0 // loop_header
    %s13 = sphi 0, %s17
    %p14 = scmp.ge.s32.totalorder %s13, 4
    %s23 = sphi 0, %s25
    %s26 = sphi 0, %s23
    %s27 = sphi 0, %s26
    %s43 = sphi 0, %s27
    %s47 = sphi 0, %s47
    %s49 = sphi 0, %s47
    %s50 = sphi 0, %s49
    %s64 = sphi 0, %s50
    %s68 = sphi 0, %s68
    %s70 = sphi 0, %s68
    %s71 = sphi 0, %s70
    %s85 = sphi 0, %s71
    %s89 = sphi 0, %s89
    %s91 = sphi 0, %s89
    %s92 = sphi 0, %s91
    %s106 = sphi 0, %s92
    %s110 = sphi 0, %s110
    %s112 = sphi 0, %s110
    %s113 = sphi 0, %s112
    %s127 = sphi 0, %s113
    %s131 = sphi 0, %s131
    %s133 = sphi 0, %s131
    %s134 = sphi 0, %s133
    %s148 = sphi 0, %s134
    %s152 = sphi 0, %s152
    %s154 = sphi 0, %s152
    %s155 = sphi 0, %s154
    %s169 = sphi 0, %s155
    %s175 = sphi 0, %s177
    %s178 = sphi 0, %s175
    %s179 = sphi 0, %s178
    %s195 = sphi 0, %s179
  $region4: #{double_conv.1} parent=0 // loop_header_branch
    %16 = sbr.rel (%p14) target = $region8
  $region5: #{double_conv.1} parent=0 // loop_body
    %s18 = ssub.s32 %s13, 1
    %s19 = ssub.s32 %s13, 2
    %s20 = sadd.s32 %s13, 1
    %s21 = ssub.s32 %s13, %s20
    %p22 = scmp.eq.s32.totalorder %s21, 0
    %s24 = sadd.s32 %s23, 1
    %s25 = scalar_select %p22, %s23, %s24
    %p28 = pneg %p22
    %p29 = scmp.eq.s32.totalorder %s13, 1
    %p30 = por %p28, %p29
    %p31 = scmp.ne.s32.totalorder %s23, %s26
    %p32 = scmp.eq.s32.totalorder %s13, 0
    %p33 = por %p31, %p32
    %p34 = scmp.ne.s32.totalorder %s23, %s26
    %p35 = scmp.eq.s32.totalorder %s18, 1
    %p36 = por %p34, %p35
    %p37 = scmp.ne.s32.totalorder %s26, %s27
    %p38 = scmp.eq.s32.totalorder %s18, 0
    %p39 = por %p37, %p38
    %p40 = scmp.ne.s32.totalorder %s26, %s27
    %p41 = scmp.eq.s32.totalorder %s19, 1
    %p42 = por %p40, %p41
    %p44 = scmp.ne.s32.totalorder %s27, %s43
    %p45 = scmp.eq.s32.totalorder %s19, 0
    %p46 = por %p44, %p45
    %s48 = sadd.s32 %s47, 1
    %p51 = scmp.eq.s32.totalorder %s13, 1
    %p52 = scmp.ne.s32.totalorder %s47, %s49
    %p53 = scmp.eq.s32.totalorder %s13, 0
    %p54 = por %p52, %p53
    %p55 = scmp.ne.s32.totalorder %s47, %s49
    %p56 = scmp.eq.s32.totalorder %s18, 1
    %p57 = por %p55, %p56
    %p58 = scmp.ne.s32.totalorder %s49, %s50
    %p59 = scmp.eq.s32.totalorder %s18, 0
    %p60 = por %p58, %p59
    %p61 = scmp.ne.s32.totalorder %s49, %s50
    %p62 = scmp.eq.s32.totalorder %s19, 1
    %p63 = por %p61, %p62
    %p65 = scmp.ne.s32.totalorder %s50, %s64
    %p66 = scmp.eq.s32.totalorder %s19, 0
    %p67 = por %p65, %p66
    %s69 = sadd.s32 %s68, 1
    %p72 = scmp.eq.s32.totalorder %s13, 1
    %p73 = scmp.ne.s32.totalorder %s68, %s70
    %p74 = scmp.eq.s32.totalorder %s13, 0
    %p75 = por %p73, %p74
    %p76 = scmp.ne.s32.totalorder %s68, %s70
    %p77 = scmp.eq.s32.totalorder %s18, 1
    %p78 = por %p76, %p77
    %p79 = scmp.ne.s32.totalorder %s70, %s71
    %p80 = scmp.eq.s32.totalorder %s18, 0
    %p81 = por %p79, %p80
    %p82 = scmp.ne.s32.totalorder %s70, %s71
    %p83 = scmp.eq.s32.totalorder %s19, 1
    %p84 = por %p82, %p83
    %p86 = scmp.ne.s32.totalorder %s71, %s85
    %p87 = scmp.eq.s32.totalorder %s19, 0
    %p88 = por %p86, %p87
    %s90 = sadd.s32 %s89, 1
    %p93 = scmp.eq.s32.totalorder %s13, 1
    %p94 = scmp.ne.s32.totalorder %s89, %s91
    %p95 = scmp.eq.s32.totalorder %s13, 0
    %p96 = por %p94, %p95
    %p97 = scmp.ne.s32.totalorder %s89, %s91
    %p98 = scmp.eq.s32.totalorder %s18, 1
    %p99 = por %p97, %p98
    %p100 = scmp.ne.s32.totalorder %s91, %s92
    %p101 = scmp.eq.s32.totalorder %s18, 0
    %p102 = por %p100, %p101
    %p103 = scmp.ne.s32.totalorder %s91, %s92
    %p104 = scmp.eq.s32.totalorder %s19, 1
    %p105 = por %p103, %p104
    %p107 = scmp.ne.s32.totalorder %s92, %s106
    %p108 = scmp.eq.s32.totalorder %s19, 0
    %p109 = por %p107, %p108
    %s111 = sadd.s32 %s110, 1
    %p114 = scmp.eq.s32.totalorder %s13, 1
    %p115 = scmp.ne.s32.totalorder %s110, %s112
    %p116 = scmp.eq.s32.totalorder %s13, 0
    %p117 = por %p115, %p116
    %p118 = scmp.ne.s32.totalorder %s110, %s112
    %p119 = scmp.eq.s32.totalorder %s18, 1
    %p120 = por %p118, %p119
    %p121 = scmp.ne.s32.totalorder %s112, %s113
    %p122 = scmp.eq.s32.totalorder %s18, 0
    %p123 = por %p121, %p122
    %p124 = scmp.ne.s32.totalorder %s112, %s113
    %p125 = scmp.eq.s32.totalorder %s19, 1
    %p126 = por %p124, %p125
    %p128 = scmp.ne.s32.totalorder %s113, %s127
    %p129 = scmp.eq.s32.totalorder %s19, 0
    %p130 = por %p128, %p129
    %s132 = sadd.s32 %s131, 1
    %p135 = scmp.eq.s32.totalorder %s13, 1
    %p136 = scmp.ne.s32.totalorder %s131, %s133
    %p137 = scmp.eq.s32.totalorder %s13, 0
    %p138 = por %p136, %p137
    %p139 = scmp.ne.s32.totalorder %s131, %s133
    %p140 = scmp.eq.s32.totalorder %s18, 1
    %p141 = por %p139, %p140
    %p142 = scmp.ne.s32.totalorder %s133, %s134
    %p143 = scmp.eq.s32.totalorder %s18, 0
    %p144 = por %p142, %p143
    %p145 = scmp.ne.s32.totalorder %s133, %s134
    %p146 = scmp.eq.s32.totalorder %s19, 1
    %p147 = por %p145, %p146
    %p149 = scmp.ne.s32.totalorder %s134, %s148
    %p150 = scmp.eq.s32.totalorder %s19, 0
    %p151 = por %p149, %p150
    %s153 = sadd.s32 %s152, 1
    %p156 = scmp.eq.s32.totalorder %s13, 1
    %p157 = scmp.ne.s32.totalorder %s152, %s154
    %p158 = scmp.eq.s32.totalorder %s13, 0
    %p159 = por %p157, %p158
    %p160 = scmp.ne.s32.totalorder %s152, %s154
    %p161 = scmp.eq.s32.totalorder %s18, 1
    %p162 = por %p160, %p161
    %p163 = scmp.ne.s32.totalorder %s154, %s155
    %p164 = scmp.eq.s32.totalorder %s18, 0
    %p165 = por %p163, %p164
    %p166 = scmp.ne.s32.totalorder %s154, %s155
    %p167 = scmp.eq.s32.totalorder %s19, 1
    %p168 = por %p166, %p167
    %p170 = scmp.ne.s32.totalorder %s155, %s169
    %p171 = scmp.eq.s32.totalorder %s19, 0
    %p172 = por %p170, %p171
    %s173 = ssub.s32 %s13, %s20
    %p174 = scmp.eq.s32.totalorder %s173, 0
    %s176 = sadd.s32 %s175, 1
    %s177 = scalar_select %p174, %s175, %s176
    %p180 = pneg %p174
    %p181 = scmp.eq.s32.totalorder %s13, 1
    %p182 = por %p180, %p181
    %p183 = scmp.ne.s32.totalorder %s175, %s178
    %p184 = scmp.eq.s32.totalorder %s13, 0
    %p185 = por %p183, %p184
    %p186 = scmp.ne.s32.totalorder %s175, %s178
    %p187 = scmp.eq.s32.totalorder %s18, 1
    %p188 = por %p186, %p187
    %p189 = scmp.ne.s32.totalorder %s178, %s179
    %p190 = scmp.eq.s32.totalorder %s18, 0
    %p191 = por %p189, %p190
    %p192 = scmp.ne.s32.totalorder %s178, %s179
    %p193 = scmp.eq.s32.totalorder %s19, 1
    %p194 = por %p192, %p193
    %p196 = scmp.ne.s32.totalorder %s179, %s195
    %p197 = scmp.eq.s32.totalorder %s19, 0
    %p198 = por %p196, %p197
    %p199 = scmp.le.s32.totalorder 1, %s13
    %p200 = scmp.lt.s32.totalorder %s13, 3
    %p201 = pnand %p199, %p200
    %p202 = pneg %p201
    // Predicated region
    $region9: #{double_conv.1} parent=5 // pred_check
      _
    $region10: #{double_conv.1} parent=5 // pred_check_branch
      %204 = sbr.rel (%p201) target = $region12
    $region11: #{double_conv.1} parent=5 // pred_region
      %s205 = ssub.s32 %s13, 1
      // Predicated region
      $region13: #{double_conv.1} parent=11 // pred_check
        %p206 = pneg %p60
      $region14: #{double_conv.1} parent=11 // pred_check_branch
        %208 = sbr.rel (%p206) target = $region16
      $region15: #{double_conv.1} parent=11 // pred_region
        _
      $region16: #{double_conv.1} parent=11 // pred_fallthru
        _
      // Predicated region
      $region17: #{double_conv.1} parent=11 // pred_check
        %p209 = pneg %p81
      $region18: #{double_conv.1} parent=11 // pred_check_branch
        %211 = sbr.rel (%p209) target = $region20
      $region19: #{double_conv.1} parent=11 // pred_region
        _
      $region20: #{double_conv.1} parent=11 // pred_fallthru
        _
      // Predicated region
      $region21: #{double_conv.1} parent=11 // pred_check
        %p212 = pneg %p102
      $region22: #{double_conv.1} parent=11 // pred_check_branch
        %214 = sbr.rel (%p212) target = $region24
      $region23: #{double_conv.1} parent=11 // pred_region
        _
      $region24: #{double_conv.1} parent=11 // pred_fallthru
        _
      // Predicated region
      $region25: #{double_conv.1} parent=11 // pred_check
        %p215 = pneg %p123
      $region26: #{double_conv.1} parent=11 // pred_check_branch
        %217 = sbr.rel (%p215) target = $region28
      $region27: #{double_conv.1} parent=11 // pred_region
        _
      $region28: #{double_conv.1} parent=11 // pred_fallthru
        _
      // Predicated region
      $region29: #{double_conv.1} parent=11 // pred_check
        %p218 = pneg %p144
      $region30: #{double_conv.1} parent=11 // pred_check_branch
        %220 = sbr.rel (%p218) target = $region32
      $region31: #{double_conv.1} parent=11 // pred_region
        _
      $region32: #{double_conv.1} parent=11 // pred_fallthru
        _
      // Predicated region
      $region33: #{double_conv.1} parent=11 // pred_check
        %p221 = pneg %p165
      $region34: #{double_conv.1} parent=11 // pred_check_branch
        %223 = sbr.rel (%p221) target = $region36
      $region35: #{double_conv.1} parent=11 // pred_region
        _
      $region36: #{double_conv.1} parent=11 // pred_fallthru
        _
    $region12: #{double_conv.1} parent=5 // pred_fallthru
      _
    %p224 = scmp.lt.s32.totalorder %s13, 2
    // Predicated region
    $region37: #{double_conv.1} parent=5 // pred_check
      %p225 = pneg %p224
    $region38: #{double_conv.1} parent=5 // pred_check_branch
      %227 = sbr.rel (%p225) target = $region40
    $region39: #{double_conv.1} parent=5 // pred_region
      // Predicated region
      $region41: #{double_conv.1} parent=39 // pred_check
        %p228 = pneg %p33
      $region42: #{double_conv.1} parent=39 // pred_check_branch
        %230 = sbr.rel (%p228) target = $region44
      $region43: #{double_conv.1} parent=39 // pred_region
        %p231 = scmp.lt.s32.totalorder %s13, 1
        %s232 = scalar_select %p231, %s13, 1
        %s233 = smul.addr %s232, 3
        %s234 = smul.addr %s233, 4
        %s235 = scalar_lea.vmem %s0, %s234
      $region44: #{double_conv.1} parent=39 // pred_fallthru
        _
    $region40: #{double_conv.1} parent=5 // pred_fallthru
      _
    %p236 = scmp.le.s32.totalorder 1, %s13
    %p237 = scmp.lt.s32.totalorder %s13, 3
    %p238 = pnand %p236, %p237
    %p239 = pneg %p238
    // Predicated region
    $region45: #{double_conv.1} parent=5 // pred_check
      _
    $region46: #{double_conv.1} parent=5 // pred_check_branch
      %241 = sbr.rel (%p238) target = $region48
    $region47: #{double_conv.1} parent=5 // pred_region
      %s242 = ssub.s32 %s13, 1
      %p243 = scmp.lt.s32.totalorder %s18, 1
      %s244 = scalar_select %p243, %s18, 1
      %s245 = smul.addr %s244, 3
      %s246 = smul.addr %s245, 4
      %s247 = scalar_lea.vmem %s0, %s246
      %p248 = pneg %p39
      %p249 = pneg %p36
      %p250 = pneg %p60
      %p251 = pneg %p57
      %p252 = pneg %p81
      %p253 = pneg %p78
      %p254 = pneg %p102
      %p255 = pneg %p99
      %p256 = pneg %p123
      %p257 = pneg %p120
      %p258 = pneg %p144
      %p259 = pneg %p141
      %p260 = pneg %p165
      %p261 = pneg %p162
      %p262 = pneg %p191
      %p263 = pneg %p188
      %p264 = scmp.lt.s32.totalorder %s18, 1
      %s265 = scalar_select %p264, %s18, 1
      %s266 = smul.addr %s265, 2
      %s267 = smul.addr %s266, 8
      %s268 = scalar_lea.vmem %s7, %s267
      %p269 = scmp.lt.s32.totalorder %s18, 1
      %s270 = scalar_select %p269, %s18, 1
      %s271 = smul.addr %s270, 3
      %s272 = smul.addr %s271, 4
      %s273 = scalar_lea.vmem %s0, %s272
      %p274 = scmp.lt.s32.totalorder %s18, 1
      %s275 = scalar_select %p274, %s18, 1
      %s276 = smul.addr %s275, 2
      %s277 = smul.addr %s276, 8
      %s278 = scalar_lea.vmem %s7, %s277
      %v280 = vld [vmem:[%s273] sm:$0xff]
      %v281 = vld [vmem:[%s273 + $0x8] sm:$0xf]
      %v283 = vcombine.high %v280, %v280
      %v285 = vpack.c.bf16 %v280, %v280
      %v286 = vpack.c.bf16 %v283, %v283
      %v287 = vpack.c.bf16 %v281, %v281
      %v288 = vld [vmem:[%s1] sm:$0xf]
      %s289 = scalar_lea.vmem %s1, 4
      %v290 = vld [vmem:[%s289] sm:$0xf]
      %294 = vrot.lane.b32.xlu0 %v285, 127
      %v295 = vpop.permute.xlu0 %294
      %296 = vrot.lane.b32.xlu0 %v286, 127
      %v297 = vpop.permute.xlu0 %296
      %298 = vrot.lane.b32.xlu0 %v287, 127
      %v299 = vpop.permute.xlu0 %298
      %vm300 = vcmask 1039360
      %v301 = vsel %vm300, %v295, %v297
      %v302 = vsel %vm300, %v297, %v299
      %vm303 = vcmask 31744
      %v305 = vsel %vm303, %v290, 0
      %vm307 = vcmask 1041408
      %v309 = vsel %vm307, %v301, 0
      %v312 = vsel %vm307, %v302, 0
      %v315 = vsel %vm307, %v299, 0
      %317 = vmatprep.subr.bf16.mxu0 %v312
      %318 = vmatpush1.bf16.msra.mxu0 %v309
      %319 = vmatprep.subr.bf16.mxu0 0
      %320 = vmatpush1.bf16.msra.mxu0 0
      %321 = vmatprep.subr.bf16.mxu0 0
      %322 = vmatpush1.bf16.msra.mxu0 0
      %323 = vmatprep.subr.bf16.mxu0 0
      %324 = vmatpush1.bf16.msra.mxu0 0
      %325 = vmatprep.subr.bf16.mxu0 0
      %326 = vmatpush1.bf16.msra.mxu0 0
      %327 = vmatprep.subr.bf16.mxu0 0
      %328 = vmatpush1.bf16.msra.mxu0 0
      %329 = vmatprep.subr.bf16.mxu0 0
      %330 = vmatpush1.bf16.msra.mxu0 0
      %331 = vmatprep.subr.bf16.mxu0 0
      %332 = vmatpush1.bf16.msra.mxu0 0
      %333 = vmatprep.subr.bf16.mxu0 0
      %334 = vmatpush1.bf16.msra.mxu0 0
      %335 = vmatprep.subr.bf16.mxu0 0
      %336 = vmatpush1.bf16.msra.mxu0 0
      %337 = vmatprep.subr.bf16.mxu0 0
      %338 = vmatpush1.bf16.msra.mxu0 0
      %339 = vmatprep.subr.bf16.mxu0 0
      %340 = vmatpush1.bf16.msra.mxu0 0
      %341 = vmatprep.subr.bf16.mxu0 0
      %342 = vmatpush1.bf16.msra.mxu0 0
      %343 = vmatprep.subr.bf16.mxu0 0
      %344 = vmatpush1.bf16.msra.mxu0 0
      %345 = vmatprep.subr.bf16.mxu0 0
      %346 = vmatpush1.bf16.msra.mxu0 0
      %347 = vmatprep.subr.bf16.mxu0 0
      %348 = vmatpush1.bf16.msra.mxu0 0
      %349 = vmatprep.mubr.bf16.mxu0 0
      %350 = vmatmul.mubr.bf16.gmra.mrb[0].mxu0 %v305
      %v351 = vpop.f32.mrb[0].mxu0
      %v352 = vadd.f32 0.0, %v351
      %v353 = vpop.f32.mrb[0].mxu0
      %v354 = vadd.f32 0.0, %v353
      %v355 = vpop.f32.mrb[0].mxu0
      %v356 = vpop.f32.mrb[0].mxu0
      %357 = vdwg.mxu0
      %358 = vmatprep.subr.bf16.mxu0 0
      %359 = vmatpush1.bf16.msra.mxu0 %v315
      %360 = vmatprep.subr.bf16.mxu0 0
      %361 = vmatpush1.bf16.msra.mxu0 0
      %362 = vmatprep.subr.bf16.mxu0 0
      %363 = vmatpush1.bf16.msra.mxu0 0
      %364 = vmatprep.subr.bf16.mxu0 0
      %365 = vmatpush1.bf16.msra.mxu0 0
      %366 = vmatprep.subr.bf16.mxu0 0
      %367 = vmatpush1.bf16.msra.mxu0 0
      %368 = vmatprep.subr.bf16.mxu0 0
      %369 = vmatpush1.bf16.msra.mxu0 0
      %370 = vmatprep.subr.bf16.mxu0 0
      %371 = vmatpush1.bf16.msra.mxu0 0
      %372 = vmatprep.subr.bf16.mxu0 0
      %373 = vmatpush1.bf16.msra.mxu0 0
      %374 = vmatprep.subr.bf16.mxu0 0
      %375 = vmatpush1.bf16.msra.mxu0 0
      %376 = vmatprep.subr.bf16.mxu0 0
      %377 = vmatpush1.bf16.msra.mxu0 0
      %378 = vmatprep.subr.bf16.mxu0 0
      %379 = vmatpush1.bf16.msra.mxu0 0
      %380 = vmatprep.subr.bf16.mxu0 0
      %381 = vmatpush1.bf16.msra.mxu0 0
      %382 = vmatprep.subr.bf16.mxu0 0
      %383 = vmatpush1.bf16.msra.mxu0 0
      %384 = vmatprep.subr.bf16.mxu0 0
      %385 = vmatpush1.bf16.msra.mxu0 0
      %386 = vmatprep.subr.bf16.mxu0 0
      %387 = vmatpush1.bf16.msra.mxu0 0
      %388 = vmatprep.subr.bf16.mxu0 0
      %389 = vmatpush1.bf16.msra.mxu0 0
      %390 = vmatprep.mubr.bf16.mxu0 0
      %391 = vmatmul.mubr.bf16.gmra.mrb[0].mxu0 %v305
      %v392 = vpop.f32.mrb[0].mxu0
      %v393 = vadd.f32 0.0, %v392
      %v394 = vpop.f32.mrb[0].mxu0
      %v395 = vpop.f32.mrb[0].mxu0
      %v396 = vpop.f32.mrb[0].mxu0
      %397 = vdwg.mxu0
      %v399 = vsel %vm303, %v288, 0
      %v402 = vsel %vm307, %v285, 0
      %v405 = vsel %vm307, %v286, 0
      %v408 = vsel %vm307, %v287, 0
      %410 = vmatprep.subr.bf16.mxu0 %v405
      %411 = vmatpush1.bf16.msra.mxu0 %v402
      %412 = vmatprep.subr.bf16.mxu0 0
      %413 = vmatpush1.bf16.msra.mxu0 0
      %414 = vmatprep.subr.bf16.mxu0 0
      %415 = vmatpush1.bf16.msra.mxu0 0
      %416 = vmatprep.subr.bf16.mxu0 0
      %417 = vmatpush1.bf16.msra.mxu0 0
      %418 = vmatprep.subr.bf16.mxu0 0
      %419 = vmatpush1.bf16.msra.mxu0 0
      %420 = vmatprep.subr.bf16.mxu0 0
      %421 = vmatpush1.bf16.msra.mxu0 0
      %422 = vmatprep.subr.bf16.mxu0 0
      %423 = vmatpush1.bf16.msra.mxu0 0
      %424 = vmatprep.subr.bf16.mxu0 0
      %425 = vmatpush1.bf16.msra.mxu0 0
      %426 = vmatprep.subr.bf16.mxu0 0
      %427 = vmatpush1.bf16.msra.mxu0 0
      %428 = vmatprep.subr.bf16.mxu0 0
      %429 = vmatpush1.bf16.msra.mxu0 0
      %430 = vmatprep.subr.bf16.mxu0 0
      %431 = vmatpush1.bf16.msra.mxu0 0
      %432 = vmatprep.subr.bf16.mxu0 0
      %433 = vmatpush1.bf16.msra.mxu0 0
      %434 = vmatprep.subr.bf16.mxu0 0
      %435 = vmatpush1.bf16.msra.mxu0 0
      %436 = vmatprep.subr.bf16.mxu0 0
      %437 = vmatpush1.bf16.msra.mxu0 0
      %438 = vmatprep.subr.bf16.mxu0 0
      %439 = vmatpush1.bf16.msra.mxu0 0
      %440 = vmatprep.subr.bf16.mxu0 0
      %441 = vmatpush1.bf16.msra.mxu0 0
      %442 = vmatprep.mubr.bf16.mxu0 0
      %443 = vmatmul.mubr.bf16.gmra.mrb[0].mxu0 %v399
      %v444 = vpop.f32.mrb[0].mxu0
      %v445 = vadd.f32 %v352, %v444
      %v446 = vpop.f32.mrb[0].mxu0
      %v447 = vadd.f32 %v354, %v446
      %v448 = vpop.f32.mrb[0].mxu0
      %v449 = vpop.f32.mrb[0].mxu0
      %450 = vdwg.mxu0
      %451 = vmatprep.subr.bf16.mxu0 0
      %452 = vmatpush1.bf16.msra.mxu0 %v408
      %453 = vmatprep.subr.bf16.mxu0 0
      %454 = vmatpush1.bf16.msra.mxu0 0
      %455 = vmatprep.subr.bf16.mxu0 0
      %456 = vmatpush1.bf16.msra.mxu0 0
      %457 = vmatprep.subr.bf16.mxu0 0
      %458 = vmatpush1.bf16.msra.mxu0 0
      %459 = vmatprep.subr.bf16.mxu0 0
      %460 = vmatpush1.bf16.msra.mxu0 0
      %461 = vmatprep.subr.bf16.mxu0 0
      %462 = vmatpush1.bf16.msra.mxu0 0
      %463 = vmatprep.subr.bf16.mxu0 0
      %464 = vmatpush1.bf16.msra.mxu0 0
      %465 = vmatprep.subr.bf16.mxu0 0
      %466 = vmatpush1.bf16.msra.mxu0 0
      %467 = vmatprep.subr.bf16.mxu0 0
      %468 = vmatpush1.bf16.msra.mxu0 0
      %469 = vmatprep.subr.bf16.mxu0 0
      %470 = vmatpush1.bf16.msra.mxu0 0
      %471 = vmatprep.subr.bf16.mxu0 0
      %472 = vmatpush1.bf16.msra.mxu0 0
      %473 = vmatprep.subr.bf16.mxu0 0
      %474 = vmatpush1.bf16.msra.mxu0 0
      %475 = vmatprep.subr.bf16.mxu0 0
      %476 = vmatpush1.bf16.msra.mxu0 0
      %477 = vmatprep.subr.bf16.mxu0 0
      %478 = vmatpush1.bf16.msra.mxu0 0
      %479 = vmatprep.subr.bf16.mxu0 0
      %480 = vmatpush1.bf16.msra.mxu0 0
      %481 = vmatprep.subr.bf16.mxu0 0
      %482 = vmatpush1.bf16.msra.mxu0 0
      %483 = vmatprep.mubr.bf16.mxu0 0
      %484 = vmatmul.mubr.bf16.gmra.mrb[0].mxu0 %v399
      %v485 = vpop.f32.mrb[0].mxu0
      %v486 = vadd.f32 %v393, %v485
      %v487 = vpop.f32.mrb[0].mxu0
      %v488 = vpop.f32.mrb[0].mxu0
      %v489 = vpop.f32.mrb[0].mxu0
      %490 = vdwg.mxu0
      %s491 = scalar_lea.vmem %s1, 8
      %v492 = vld [vmem:[%s491] sm:$0xf]
      %493 = vrot.lane.b32.xlu0 %v285, 126
      %v494 = vpop.permute.xlu0 %493
      %495 = vrot.lane.b32.xlu0 %v286, 126
      %v496 = vpop.permute.xlu0 %495
      %497 = vrot.lane.b32.xlu0 %v287, 126
      %v498 = vpop.permute.xlu0 %497
      %vm499 = vcmask 1031168
      %v500 = vsel %vm499, %v494, %v496
      %v501 = vsel %vm499, %v496, %v498
      %v503 = vsel %vm303, %v492, 0
      %v506 = vsel %vm307, %v500, 0
      %v509 = vsel %vm307, %v501, 0
      %v512 = vsel %vm307, %v498, 0
      %514 = vmatprep.subr.bf16.mxu0 %v509
      %515 = vmatpush1.bf16.msra.mxu0 %v506
      %516 = vmatprep.subr.bf16.mxu0 0
      %517 = vmatpush1.bf16.msra.mxu0 0
      %518 = vmatprep.subr.bf16.mxu0 0
      %519 = vmatpush1.bf16.msra.mxu0 0
      %520 = vmatprep.subr.bf16.mxu0 0
      %521 = vmatpush1.bf16.msra.mxu0 0
      %522 = vmatprep.subr.bf16.mxu0 0
      %523 = vmatpush1.bf16.msra.mxu0 0
      %524 = vmatprep.subr.bf16.mxu0 0
      %525 = vmatpush1.bf16.msra.mxu0 0
      %526 = vmatprep.subr.bf16.mxu0 0
      %527 = vmatpush1.bf16.msra.mxu0 0
      %528 = vmatprep.subr.bf16.mxu0 0
      %529 = vmatpush1.bf16.msra.mxu0 0
      %530 = vmatprep.subr.bf16.mxu0 0
      %531 = vmatpush1.bf16.msra.mxu0 0
      %532 = vmatprep.subr.bf16.mxu0 0
      %533 = vmatpush1.bf16.msra.mxu0 0
      %534 = vmatprep.subr.bf16.mxu0 0
      %535 = vmatpush1.bf16.msra.mxu0 0
      %536 = vmatprep.subr.bf16.mxu0 0
      %537 = vmatpush1.bf16.msra.mxu0 0
      %538 = vmatprep.subr.bf16.mxu0 0
      %539 = vmatpush1.bf16.msra.mxu0 0
      %540 = vmatprep.subr.bf16.mxu0 0
      %541 = vmatpush1.bf16.msra.mxu0 0
      %542 = vmatprep.subr.bf16.mxu0 0
      %543 = vmatpush1.bf16.msra.mxu0 0
      %544 = vmatprep.subr.bf16.mxu0 0
      %545 = vmatpush1.bf16.msra.mxu0 0
      %546 = vmatprep.mubr.bf16.mxu0 0
      %547 = vmatmul.mubr.bf16.gmra.mrb[0].mxu0 %v503
      %v548 = vpop.f32.mrb[0].mxu0
      %v549 = vadd.f32 0.0, %v548
      %v550 = vpop.f32.mrb[0].mxu0
      %v551 = vadd.f32 0.0, %v550
      %v552 = vpop.f32.mrb[0].mxu0
      %v553 = vpop.f32.mrb[0].mxu0
      %554 = vdwg.mxu0
      %555 = vmatprep.subr.bf16.mxu0 0
      %556 = vmatpush1.bf16.msra.mxu0 %v512
      %557 = vmatprep.subr.bf16.mxu0 0
      %558 = vmatpush1.bf16.msra.mxu0 0
      %559 = vmatprep.subr.bf16.mxu0 0
      %560 = vmatpush1.bf16.msra.mxu0 0
      %561 = vmatprep.subr.bf16.mxu0 0
      %562 = vmatpush1.bf16.msra.mxu0 0
      %563 = vmatprep.subr.bf16.mxu0 0
      %564 = vmatpush1.bf16.msra.mxu0 0
      %565 = vmatprep.subr.bf16.mxu0 0
      %566 = vmatpush1.bf16.msra.mxu0 0
      %567 = vmatprep.subr.bf16.mxu0 0
      %568 = vmatpush1.bf16.msra.mxu0 0
      %569 = vmatprep.subr.bf16.mxu0 0
      %570 = vmatpush1.bf16.msra.mxu0 0
      %571 = vmatprep.subr.bf16.mxu0 0
      %572 = vmatpush1.bf16.msra.mxu0 0
      %573 = vmatprep.subr.bf16.mxu0 0
      %574 = vmatpush1.bf16.msra.mxu0 0
      %575 = vmatprep.subr.bf16.mxu0 0
      %576 = vmatpush1.bf16.msra.mxu0 0
      %577 = vmatprep.subr.bf16.mxu0 0
      %578 = vmatpush1.bf16.msra.mxu0 0
      %579 = vmatprep.subr.bf16.mxu0 0
      %580 = vmatpush1.bf16.msra.mxu0 0
      %581 = vmatprep.subr.bf16.mxu0 0
      %582 = vmatpush1.bf16.msra.mxu0 0
      %583 = vmatprep.subr.bf16.mxu0 0
      %584 = vmatpush1.bf16.msra.mxu0 0
      %585 = vmatprep.subr.bf16.mxu0 0
      %586 = vmatpush1.bf16.msra.mxu0 0
      %587 = vmatprep.mubr.bf16.mxu0 0
      %588 = vmatmul.mubr.bf16.gmra.mrb[0].mxu0 %v503
      %v589 = vpop.f32.mrb[0].mxu0
      %v590 = vadd.f32 0.0, %v589
      %v591 = vpop.f32.mrb[0].mxu0
      %v592 = vpop.f32.mrb[0].mxu0
      %v593 = vpop.f32.mrb[0].mxu0
      %594 = vdwg.mxu0
      %v595 = vadd.f32 %v445, %v549
      %v596 = vadd.f32 %v447, %v551
      %v597 = vadd.f32 %v486, %v590
      %s598 = scalar_lea.vmem %s1, 12
      %v599 = vld [vmem:[%s598] sm:$0xf]
      %600 = vrot.lane.b32.xlu0 %v285, 110
      %v601 = vpop.permute.xlu0 %600
      %602 = vrot.lane.b32.xlu0 %v286, 110
      %v603 = vpop.permute.xlu0 %602
      %604 = vrot.lane.b32.xlu0 %v287, 110
      %v605 = vpop.permute.xlu0 %604
      %vm606 = vcmask 900096
      %v607 = vsel %vm606, %v601, %v603
      %v608 = vsel %vm606, %v603, %v605
      %v610 = vsel %vm303, %v599, 0
      %v613 = vsel %vm307, %v607, 0
      %v616 = vsel %vm307, %v608, 0
      %v619 = vsel %vm307, %v605, 0
      %621 = vmatprep.subr.bf16.mxu0 %v616
      %622 = vmatpush1.bf16.msra.mxu0 %v613
      %623 = vmatprep.subr.bf16.mxu0 0
      %624 = vmatpush1.bf16.msra.mxu0 0
      %625 = vmatprep.subr.bf16.mxu0 0
      %626 = vmatpush1.bf16.msra.mxu0 0
      %627 = vmatprep.subr.bf16.mxu0 0
      %628 = vmatpush1.bf16.msra.mxu0 0
      %629 = vmatprep.subr.bf16.mxu0 0
      %630 = vmatpush1.bf16.msra.mxu0 0
      %631 = vmatprep.subr.bf16.mxu0 0
      %632 = vmatpush1.bf16.msra.mxu0 0
      %633 = vmatprep.subr.bf16.mxu0 0
      %634 = vmatpush1.bf16.msra.mxu0 0
      %635 = vmatprep.subr.bf16.mxu0 0
      %636 = vmatpush1.bf16.msra.mxu0 0
      %637 = vmatprep.subr.bf16.mxu0 0
      %638 = vmatpush1.bf16.msra.mxu0 0
      %639 = vmatprep.subr.bf16.mxu0 0
      %640 = vmatpush1.bf16.msra.mxu0 0
      %641 = vmatprep.subr.bf16.mxu0 0
      %642 = vmatpush1.bf16.msra.mxu0 0
      %643 = vmatprep.subr.bf16.mxu0 0
      %644 = vmatpush1.bf16.msra.mxu0 0
      %645 = vmatprep.subr.bf16.mxu0 0
      %646 = vmatpush1.bf16.msra.mxu0 0
      %647 = vmatprep.subr.bf16.mxu0 0
      %648 = vmatpush1.bf16.msra.mxu0 0
      %649 = vmatprep.subr.bf16.mxu0 0
      %650 = vmatpush1.bf16.msra.mxu0 0
      %651 = vmatprep.subr.bf16.mxu0 0
      %652 = vmatpush1.bf16.msra.mxu0 0
      %653 = vmatprep.mubr.bf16.mxu0 0
      %654 = vmatmul.mubr.bf16.gmra.mrb[0].mxu0 %v610
      %v655 = vpop.f32.mrb[0].mxu0
      %v656 = vadd.f32 0.0, %v655
      %v657 = vpop.f32.mrb[0].mxu0
      %v658 = vadd.f32 0.0, %v657
      %v659 = vpop.f32.mrb[0].mxu0
      %v660 = vpop.f32.mrb[0].mxu0
      %661 = vdwg.mxu0
      %662 = vmatprep.subr.bf16.mxu0 0
      %663 = vmatpush1.bf16.msra.mxu0 %v619
      %664 = vmatprep.subr.bf16.mxu0 0
      %665 = vmatpush1.bf16.msra.mxu0 0
      %666 = vmatprep.subr.bf16.mxu0 0
      %667 = vmatpush1.bf16.msra.mxu0 0
      %668 = vmatprep.subr.bf16.mxu0 0
      %669 = vmatpush1.bf16.msra.mxu0 0
      %670 = vmatprep.subr.bf16.mxu0 0
      %671 = vmatpush1.bf16.msra.mxu0 0
      %672 = vmatprep.subr.bf16.mxu0 0
      %673 = vmatpush1.bf16.msra.mxu0 0
      %674 = vmatprep.subr.bf16.mxu0 0
      %675 = vmatpush1.bf16.msra.mxu0 0
      %676 = vmatprep.subr.bf16.mxu0 0
      %677 = vmatpush1.bf16.msra.mxu0 0
      %678 = vmatprep.subr.bf16.mxu0 0
      %679 = vmatpush1.bf16.msra.mxu0 0
      %680 = vmatprep.subr.bf16.mxu0 0
      %681 = vmatpush1.bf16.msra.mxu0 0
      %682 = vmatprep.subr.bf16.mxu0 0
      %683 = vmatpush1.bf16.msra.mxu0 0
      %684 = vmatprep.subr.bf16.mxu0 0
      %685 = vmatpush1.bf16.msra.mxu0 0
      %686 = vmatprep.subr.bf16.mxu0 0
      %687 = vmatpush1.bf16.msra.mxu0 0
      %688 = vmatprep.subr.bf16.mxu0 0
      %689 = vmatpush1.bf16.msra.mxu0 0
      %690 = vmatprep.subr.bf16.mxu0 0
      %691 = vmatpush1.bf16.msra.mxu0 0
      %692 = vmatprep.subr.bf16.mxu0 0
      %693 = vmatpush1.bf16.msra.mxu0 0
      %694 = vmatprep.mubr.bf16.mxu0 0
      %695 = vmatmul.mubr.bf16.gmra.mrb[0].mxu0 %v610
      %v696 = vpop.f32.mrb[0].mxu0
      %v697 = vadd.f32 0.0, %v696
      %v698 = vpop.f32.mrb[0].mxu0
      %v699 = vpop.f32.mrb[0].mxu0
      %v700 = vpop.f32.mrb[0].mxu0
      %701 = vdwg.mxu0
      %v702 = vadd.f32 %v595, %v656
      %v703 = vadd.f32 %v596, %v658
      %v704 = vadd.f32 %v597, %v697
      %s705 = scalar_lea.vmem %s1, 16
      %v706 = vld [vmem:[%s705] sm:$0xf]
      %707 = vrot.lane.b32.xlu0 %v285, 109
      %v708 = vpop.permute.xlu0 %707
      %709 = vrot.lane.b32.xlu0 %v286, 109
      %v710 = vpop.permute.xlu0 %709
      %711 = vrot.lane.b32.xlu0 %v287, 109
      %v712 = vpop.permute.xlu0 %711
      %vm713 = vcmask 891904
      %v714 = vsel %vm713, %v708, %v710
      %v715 = vsel %vm713, %v710, %v712
      %v717 = vsel %vm303, %v706, 0
      %v720 = vsel %vm307, %v714, 0
      %v723 = vsel %vm307, %v715, 0
      %v726 = vsel %vm307, %v712, 0
      %728 = vmatprep.subr.bf16.mxu0 %v723
      %729 = vmatpush1.bf16.msra.mxu0 %v720
      %730 = vmatprep.subr.bf16.mxu0 0
      %731 = vmatpush1.bf16.msra.mxu0 0
      %732 = vmatprep.subr.bf16.mxu0 0
      %733 = vmatpush1.bf16.msra.mxu0 0
      %734 = vmatprep.subr.bf16.mxu0 0
      %735 = vmatpush1.bf16.msra.mxu0 0
      %736 = vmatprep.subr.bf16.mxu0 0
      %737 = vmatpush1.bf16.msra.mxu0 0
      %738 = vmatprep.subr.bf16.mxu0 0
      %739 = vmatpush1.bf16.msra.mxu0 0
      %740 = vmatprep.subr.bf16.mxu0 0
      %741 = vmatpush1.bf16.msra.mxu0 0
      %742 = vmatprep.subr.bf16.mxu0 0
      %743 = vmatpush1.bf16.msra.mxu0 0
      %744 = vmatprep.subr.bf16.mxu0 0
      %745 = vmatpush1.bf16.msra.mxu0 0
      %746 = vmatprep.subr.bf16.mxu0 0
      %747 = vmatpush1.bf16.msra.mxu0 0
      %748 = vmatprep.subr.bf16.mxu0 0
      %749 = vmatpush1.bf16.msra.mxu0 0
      %750 = vmatprep.subr.bf16.mxu0 0
      %751 = vmatpush1.bf16.msra.mxu0 0
      %752 = vmatprep.subr.bf16.mxu0 0
      %753 = vmatpush1.bf16.msra.mxu0 0
      %754 = vmatprep.subr.bf16.mxu0 0
      %755 = vmatpush1.bf16.msra.mxu0 0
      %756 = vmatprep.subr.bf16.mxu0 0
      %757 = vmatpush1.bf16.msra.mxu0 0
      %758 = vmatprep.subr.bf16.mxu0 0
      %759 = vmatpush1.bf16.msra.mxu0 0
      %760 = vmatprep.mubr.bf16.mxu0 0
      %761 = vmatmul.mubr.bf16.gmra.mrb[0].mxu0 %v717
      %v762 = vpop.f32.mrb[0].mxu0
      %v763 = vadd.f32 0.0, %v762
      %v764 = vpop.f32.mrb[0].mxu0
      %v765 = vadd.f32 0.0, %v764
      %v766 = vpop.f32.mrb[0].mxu0
      %v767 = vpop.f32.mrb[0].mxu0
      %768 = vdwg.mxu0
      %769 = vmatprep.subr.bf16.mxu0 0
      %770 = vmatpush1.bf16.msra.mxu0 %v726
      %771 = vmatprep.subr.bf16.mxu0 0
      %772 = vmatpush1.bf16.msra.mxu0 0
      %773 = vmatprep.subr.bf16.mxu0 0
      %774 = vmatpush1.bf16.msra.mxu0 0
      %775 = vmatprep.subr.bf16.mxu0 0
      %776 = vmatpush1.bf16.msra.mxu0 0
      %777 = vmatprep.subr.bf16.mxu0 0
      %778 = vmatpush1.bf16.msra.mxu0 0
      %779 = vmatprep.subr.bf16.mxu0 0
      %780 = vmatpush1.bf16.msra.mxu0 0
      %781 = vmatprep.subr.bf16.mxu0 0
      %782 = vmatpush1.bf16.msra.mxu0 0
      %783 = vmatprep.subr.bf16.mxu0 0
      %784 = vmatpush1.bf16.msra.mxu0 0
      %785 = vmatprep.subr.bf16.mxu0 0
      %786 = vmatpush1.bf16.msra.mxu0 0
      %787 = vmatprep.subr.bf16.mxu0 0
      %788 = vmatpush1.bf16.msra.mxu0 0
      %789 = vmatprep.subr.bf16.mxu0 0
      %790 = vmatpush1.bf16.msra.mxu0 0
      %791 = vmatprep.subr.bf16.mxu0 0
      %792 = vmatpush1.bf16.msra.mxu0 0
      %793 = vmatprep.subr.bf16.mxu0 0
      %794 = vmatpush1.bf16.msra.mxu0 0
      %795 = vmatprep.subr.bf16.mxu0 0
      %796 = vmatpush1.bf16.msra.mxu0 0
      %797 = vmatprep.subr.bf16.mxu0 0
      %798 = vmatpush1.bf16.msra.mxu0 0
      %799 = vmatprep.subr.bf16.mxu0 0
      %800 = vmatpush1.bf16.msra.mxu0 0
      %801 = vmatprep.mubr.bf16.mxu0 0
      %802 = vmatmul.mubr.bf16.gmra.mrb[0].mxu0 %v717
      %v803 = vpop.f32.mrb[0].mxu0
      %v804 = vadd.f32 0.0, %v803
      %v805 = vpop.f32.mrb[0].mxu0
      %v806 = vpop.f32.mrb[0].mxu0
      %v807 = vpop.f32.mrb[0].mxu0
      %808 = vdwg.mxu0
      %v809 = vadd.f32 %v702, %v763
      %v810 = vadd.f32 %v703, %v765
      %v811 = vadd.f32 %v704, %v804
      %s812 = scalar_lea.vmem %s1, 20
      %v813 = vld [vmem:[%s812] sm:$0xf]
      %814 = vrot.lane.b32.xlu0 %v285, 108
      %v815 = vpop.permute.xlu0 %814
      %816 = vrot.lane.b32.xlu0 %v286, 108
      %v817 = vpop.permute.xlu0 %816
      %818 = vrot.lane.b32.xlu0 %v287, 108
      %v819 = vpop.permute.xlu0 %818
      %vm820 = vcmask 883712
      %v821 = vsel %vm820, %v815, %v817
      %v822 = vsel %vm820, %v817, %v819
      %v824 = vsel %vm303, %v813, 0
      %v827 = vsel %vm307, %v821, 0
      %v830 = vsel %vm307, %v822, 0
      %v833 = vsel %vm307, %v819, 0
      %835 = vmatprep.subr.bf16.mxu0 %v830
      %836 = vmatpush1.bf16.msra.mxu0 %v827
      %837 = vmatprep.subr.bf16.mxu0 0
      %838 = vmatpush1.bf16.msra.mxu0 0
      %839 = vmatprep.subr.bf16.mxu0 0
      %840 = vmatpush1.bf16.msra.mxu0 0
      %841 = vmatprep.subr.bf16.mxu0 0
      %842 = vmatpush1.bf16.msra.mxu0 0
      %843 = vmatprep.subr.bf16.mxu0 0
      %844 = vmatpush1.bf16.msra.mxu0 0
      %845 = vmatprep.subr.bf16.mxu0 0
      %846 = vmatpush1.bf16.msra.mxu0 0
      %847 = vmatprep.subr.bf16.mxu0 0
      %848 = vmatpush1.bf16.msra.mxu0 0
      %849 = vmatprep.subr.bf16.mxu0 0
      %850 = vmatpush1.bf16.msra.mxu0 0
      %851 = vmatprep.subr.bf16.mxu0 0
      %852 = vmatpush1.bf16.msra.mxu0 0
      %853 = vmatprep.subr.bf16.mxu0 0
      %854 = vmatpush1.bf16.msra.mxu0 0
      %855 = vmatprep.subr.bf16.mxu0 0
      %856 = vmatpush1.bf16.msra.mxu0 0
      %857 = vmatprep.subr.bf16.mxu0 0
      %858 = vmatpush1.bf16.msra.mxu0 0
      %859 = vmatprep.subr.bf16.mxu0 0
      %860 = vmatpush1.bf16.msra.mxu0 0
      %861 = vmatprep.subr.bf16.mxu0 0
      %862 = vmatpush1.bf16.msra.mxu0 0
      %863 = vmatprep.subr.bf16.mxu0 0
      %864 = vmatpush1.bf16.msra.mxu0 0
      %865 = vmatprep.subr.bf16.mxu0 0
      %866 = vmatpush1.bf16.msra.mxu0 0
      %867 = vmatprep.mubr.bf16.mxu0 0
      %868 = vmatmul.mubr.bf16.gmra.mrb[0].mxu0 %v824
      %v869 = vpop.f32.mrb[0].mxu0
      %v870 = vadd.f32 0.0, %v869
      %v871 = vpop.f32.mrb[0].mxu0
      %v872 = vadd.f32 0.0, %v871
      %v873 = vpop.f32.mrb[0].mxu0
      %v874 = vpop.f32.mrb[0].mxu0
      %875 = vdwg.mxu0
      %876 = vmatprep.subr.bf16.mxu0 0
      %877 = vmatpush1.bf16.msra.mxu0 %v833
      %878 = vmatprep.subr.bf16.mxu0 0
      %879 = vmatpush1.bf16.msra.mxu0 0
      %880 = vmatprep.subr.bf16.mxu0 0
      %881 = vmatpush1.bf16.msra.mxu0 0
      %882 = vmatprep.subr.bf16.mxu0 0
      %883 = vmatpush1.bf16.msra.mxu0 0
      %884 = vmatprep.subr.bf16.mxu0 0
      %885 = vmatpush1.bf16.msra.mxu0 0
      %886 = vmatprep.subr.bf16.mxu0 0
      %887 = vmatpush1.bf16.msra.mxu0 0
      %888 = vmatprep.subr.bf16.mxu0 0
      %889 = vmatpush1.bf16.msra.mxu0 0
      %890 = vmatprep.subr.bf16.mxu0 0
      %891 = vmatpush1.bf16.msra.mxu0 0
      %892 = vmatprep.subr.bf16.mxu0 0
      %893 = vmatpush1.bf16.msra.mxu0 0
      %894 = vmatprep.subr.bf16.mxu0 0
      %895 = vmatpush1.bf16.msra.mxu0 0
      %896 = vmatprep.subr.bf16.mxu0 0
      %897 = vmatpush1.bf16.msra.mxu0 0
      %898 = vmatprep.subr.bf16.mxu0 0
      %899 = vmatpush1.bf16.msra.mxu0 0
      %900 = vmatprep.subr.bf16.mxu0 0
      %901 = vmatpush1.bf16.msra.mxu0 0
      %902 = vmatprep.subr.bf16.mxu0 0
      %903 = vmatpush1.bf16.msra.mxu0 0
      %904 = vmatprep.subr.bf16.mxu0 0
      %905 = vmatpush1.bf16.msra.mxu0 0
      %906 = vmatprep.subr.bf16.mxu0 0
      %907 = vmatpush1.bf16.msra.mxu0 0
      %908 = vmatprep.mubr.bf16.mxu0 0
      %909 = vmatmul.mubr.bf16.gmra.mrb[0].mxu0 %v824
      %v910 = vpop.f32.mrb[0].mxu0
      %v911 = vadd.f32 0.0, %v910
      %v912 = vpop.f32.mrb[0].mxu0
      %v913 = vpop.f32.mrb[0].mxu0
      %v914 = vpop.f32.mrb[0].mxu0
      %915 = vdwg.mxu0
      %v916 = vadd.f32 %v809, %v870
      %v917 = vadd.f32 %v810, %v872
      %v918 = vadd.f32 %v811, %v911
      %s919 = scalar_lea.vmem %s1, 24
      %v920 = vld [vmem:[%s919] sm:$0xf]
      %921 = vrot.lane.b32.xlu0 %v285, 92
      %v922 = vpop.permute.xlu0 %921
      %923 = vrot.lane.b32.xlu0 %v286, 92
      %v924 = vpop.permute.xlu0 %923
      %925 = vrot.lane.b32.xlu0 %v287, 92
      %v926 = vpop.permute.xlu0 %925
      %vm927 = vcmask 752640
      %v928 = vsel %vm927, %v922, %v924
      %v929 = vsel %vm927, %v924, %v926
      %v931 = vsel %vm303, %v920, 0
      %v934 = vsel %vm307, %v928, 0
      %v937 = vsel %vm307, %v929, 0
      %v940 = vsel %vm307, %v926, 0
      %942 = vmatprep.subr.bf16.mxu0 %v937
      %943 = vmatpush1.bf16.msra.mxu0 %v934
      %944 = vmatprep.subr.bf16.mxu0 0
      %945 = vmatpush1.bf16.msra.mxu0 0
      %946 = vmatprep.subr.bf16.mxu0 0
      %947 = vmatpush1.bf16.msra.mxu0 0
      %948 = vmatprep.subr.bf16.mxu0 0
      %949 = vmatpush1.bf16.msra.mxu0 0
      %950 = vmatprep.subr.bf16.mxu0 0
      %951 = vmatpush1.bf16.msra.mxu0 0
      %952 = vmatprep.subr.bf16.mxu0 0
      %953 = vmatpush1.bf16.msra.mxu0 0
      %954 = vmatprep.subr.bf16.mxu0 0
      %955 = vmatpush1.bf16.msra.mxu0 0
      %956 = vmatprep.subr.bf16.mxu0 0
      %957 = vmatpush1.bf16.msra.mxu0 0
      %958 = vmatprep.subr.bf16.mxu0 0
      %959 = vmatpush1.bf16.msra.mxu0 0
      %960 = vmatprep.subr.bf16.mxu0 0
      %961 = vmatpush1.bf16.msra.mxu0 0
      %962 = vmatprep.subr.bf16.mxu0 0
      %963 = vmatpush1.bf16.msra.mxu0 0
      %964 = vmatprep.subr.bf16.mxu0 0
      %965 = vmatpush1.bf16.msra.mxu0 0
      %966 = vmatprep.subr.bf16.mxu0 0
      %967 = vmatpush1.bf16.msra.mxu0 0
      %968 = vmatprep.subr.bf16.mxu0 0
      %969 = vmatpush1.bf16.msra.mxu0 0
      %970 = vmatprep.subr.bf16.mxu0 0
      %971 = vmatpush1.bf16.msra.mxu0 0
      %972 = vmatprep.subr.bf16.mxu0 0
      %973 = vmatpush1.bf16.msra.mxu0 0
      %974 = vmatprep.mubr.bf16.mxu0 0
      %975 = vmatmul.mubr.bf16.gmra.mrb[0].mxu0 %v931
      %v976 = vpop.f32.mrb[0].mxu0
      %v977 = vadd.f32 0.0, %v976
      %v978 = vpop.f32.mrb[0].mxu0
      %v979 = vadd.f32 0.0, %v978
      %v980 = vpop.f32.mrb[0].mxu0
      %v981 = vpop.f32.mrb[0].mxu0
      %982 = vdwg.mxu0
      %983 = vmatprep.subr.bf16.mxu0 0
      %984 = vmatpush1.bf16.msra.mxu0 %v940
      %985 = vmatprep.subr.bf16.mxu0 0
      %986 = vmatpush1.bf16.msra.mxu0 0
      %987 = vmatprep.subr.bf16.mxu0 0
      %988 = vmatpush1.bf16.msra.mxu0 0
      %989 = vmatprep.subr.bf16.mxu0 0
      %990 = vmatpush1.bf16.msra.mxu0 0
      %991 = vmatprep.subr.bf16.mxu0 0
      %992 = vmatpush1.bf16.msra.mxu0 0
      %993 = vmatprep.subr.bf16.mxu0 0
      %994 = vmatpush1.bf16.msra.mxu0 0
      %995 = vmatprep.subr.bf16.mxu0 0
      %996 = vmatpush1.bf16.msra.mxu0 0
      %997 = vmatprep.subr.bf16.mxu0 0
      %998 = vmatpush1.bf16.msra.mxu0 0
      %999 = vmatprep.subr.bf16.mxu0 0
      %1000 = vmatpush1.bf16.msra.mxu0 0
      %1001 = vmatprep.subr.bf16.mxu0 0
      %1002 = vmatpush1.bf16.msra.mxu0 0
      %1003 = vmatprep.subr.bf16.mxu0 0
      %1004 = vmatpush1.bf16.msra.mxu0 0
      %1005 = vmatprep.subr.bf16.mxu0 0
      %1006 = vmatpush1.bf16.msra.mxu0 0
      %1007 = vmatprep.subr.bf16.mxu0 0
      %1008 = vmatpush1.bf16.msra.mxu0 0
      %1009 = vmatprep.subr.bf16.mxu0 0
      %1010 = vmatpush1.bf16.msra.mxu0 0
      %1011 = vmatprep.subr.bf16.mxu0 0
      %1012 = vmatpush1.bf16.msra.mxu0 0
      %1013 = vmatprep.subr.bf16.mxu0 0
      %1014 = vmatpush1.bf16.msra.mxu0 0
      %1015 = vmatprep.mubr.bf16.mxu0 0
      %1016 = vmatmul.mubr.bf16.gmra.mrb[0].mxu0 %v931
      %v1017 = vpop.f32.mrb[0].mxu0
      %v1018 = vadd.f32 0.0, %v1017
      %v1019 = vpop.f32.mrb[0].mxu0
      %v1020 = vpop.f32.mrb[0].mxu0
      %v1021 = vpop.f32.mrb[0].mxu0
      %1022 = vdwg.mxu0
      %v1023 = vadd.f32 %v916, %v977
      %v1024 = vadd.f32 %v917, %v979
      %v1025 = vadd.f32 %v918, %v1018
      %s1026 = scalar_lea.vmem %s1, 28
      %v1027 = vld [vmem:[%s1026] sm:$0xf]
      %1028 = vrot.lane.b32.xlu0 %v285, 91
      %v1029 = vpop.permute.xlu0 %1028
      %1030 = vrot.lane.b32.xlu0 %v286, 91
      %v1031 = vpop.permute.xlu0 %1030
      %1032 = vrot.lane.b32.xlu0 %v287, 91
      %v1033 = vpop.permute.xlu0 %1032
      %vm1034 = vcmask 744448
      %v1035 = vsel %vm1034, %v1029, %v1031
      %v1036 = vsel %vm1034, %v1031, %v1033
      %v1038 = vsel %vm303, %v1027, 0
      %v1041 = vsel %vm307, %v1035, 0
      %v1044 = vsel %vm307, %v1036, 0
      %v1047 = vsel %vm307, %v1033, 0
      %1049 = vmatprep.subr.bf16.mxu0 %v1044
      %1050 = vmatpush1.bf16.msra.mxu0 %v1041
      %1051 = vmatprep.subr.bf16.mxu0 0
      %1052 = vmatpush1.bf16.msra.mxu0 0
      %1053 = vmatprep.subr.bf16.mxu0 0
      %1054 = vmatpush1.bf16.msra.mxu0 0
      %1055 = vmatprep.subr.bf16.mxu0 0
      %1056 = vmatpush1.bf16.msra.mxu0 0
      %1057 = vmatprep.subr.bf16.mxu0 0
      %1058 = vmatpush1.bf16.msra.mxu0 0
      %1059 = vmatprep.subr.bf16.mxu0 0
      %1060 = vmatpush1.bf16.msra.mxu0 0
      %1061 = vmatprep.subr.bf16.mxu0 0
      %1062 = vmatpush1.bf16.msra.mxu0 0
      %1063 = vmatprep.subr.bf16.mxu0 0
      %1064 = vmatpush1.bf16.msra.mxu0 0
      %1065 = vmatprep.subr.bf16.mxu0 0
      %1066 = vmatpush1.bf16.msra.mxu0 0
      %1067 = vmatprep.subr.bf16.mxu0 0
      %1068 = vmatpush1.bf16.msra.mxu0 0
      %1069 = vmatprep.subr.bf16.mxu0 0
      %1070 = vmatpush1.bf16.msra.mxu0 0
      %1071 = vmatprep.subr.bf16.mxu0 0
      %1072 = vmatpush1.bf16.msra.mxu0 0
      %1073 = vmatprep.subr.bf16.mxu0 0
      %1074 = vmatpush1.bf16.msra.mxu0 0
      %1075 = vmatprep.subr.bf16.mxu0 0
      %1076 = vmatpush1.bf16.msra.mxu0 0
      %1077 = vmatprep.subr.bf16.mxu0 0
      %1078 = vmatpush1.bf16.msra.mxu0 0
      %1079 = vmatprep.subr.bf16.mxu0 0
      %1080 = vmatpush1.bf16.msra.mxu0 0
      %1081 = vmatprep.mubr.bf16.mxu0 0
      %1082 = vmatmul.mubr.bf16.gmra.mrb[0].mxu0 %v1038
      %v1083 = vpop.f32.mrb[0].mxu0
      %v1084 = vadd.f32 0.0, %v1083
      %v1085 = vpop.f32.mrb[0].mxu0
      %v1086 = vadd.f32 0.0, %v1085
      %v1087 = vpop.f32.mrb[0].mxu0
      %v1088 = vpop.f32.mrb[0].mxu0
      %1089 = vdwg.mxu0
      %1090 = vmatprep.subr.bf16.mxu0 0
      %1091 = vmatpush1.bf16.msra.mxu0 %v1047
      %1092 = vmatprep.subr.bf16.mxu0 0
      %1093 = vmatpush1.bf16.msra.mxu0 0
      %1094 = vmatprep.subr.bf16.mxu0 0
      %1095 = vmatpush1.bf16.msra.mxu0 0
      %1096 = vmatprep.subr.bf16.mxu0 0
      %1097 = vmatpush1.bf16.msra.mxu0 0
      %1098 = vmatprep.subr.bf16.mxu0 0
      %1099 = vmatpush1.bf16.msra.mxu0 0
      %1100 = vmatprep.subr.bf16.mxu0 0
      %1101 = vmatpush1.bf16.msra.mxu0 0
      %1102 = vmatprep.subr.bf16.mxu0 0
      %1103 = vmatpush1.bf16.msra.mxu0 0
      %1104 = vmatprep.subr.bf16.mxu0 0
      %1105 = vmatpush1.bf16.msra.mxu0 0
      %1106 = vmatprep.subr.bf16.mxu0 0
      %1107 = vmatpush1.bf16.msra.mxu0 0
      %1108 = vmatprep.subr.bf16.mxu0 0
      %1109 = vmatpush1.bf16.msra.mxu0 0
      %1110 = vmatprep.subr.bf16.mxu0 0
      %1111 = vmatpush1.bf16.msra.mxu0 0
      %1112 = vmatprep.subr.bf16.mxu0 0
      %1113 = vmatpush1.bf16.msra.mxu0 0
      %1114 = vmatprep.subr.bf16.mxu0 0
      %1115 = vmatpush1.bf16.msra.mxu0 0
      %1116 = vmatprep.subr.bf16.mxu0 0
      %1117 = vmatpush1.bf16.msra.mxu0 0
      %1118 = vmatprep.subr.bf16.mxu0 0
      %1119 = vmatpush1.bf16.msra.mxu0 0
      %1120 = vmatprep.subr.bf16.mxu0 0
      %1121 = vmatpush1.bf16.msra.mxu0 0
      %1122 = vmatprep.mubr.bf16.mxu0 0
      %1123 = vmatmul.mubr.bf16.gmra.mrb[0].mxu0 %v1038
      %v1124 = vpop.f32.mrb[0].mxu0
      %v1125 = vadd.f32 0.0, %v1124
      %v1126 = vpop.f32.mrb[0].mxu0
      %v1127 = vpop.f32.mrb[0].mxu0
      %v1128 = vpop.f32.mrb[0].mxu0
      %1129 = vdwg.mxu0
      %v1130 = vadd.f32 %v1023, %v1084
      %v1131 = vadd.f32 %v1024, %v1086
      %v1132 = vadd.f32 %v1025, %v1125
      %s1133 = scalar_lea.vmem %s1, 32
      %v1134 = vld [vmem:[%s1133] sm:$0xf]
      %1135 = vrot.lane.b32.xlu0 %v285, 90
      %v1136 = vpop.permute.xlu0 %1135
      %1137 = vrot.lane.b32.xlu0 %v286, 90
      %v1138 = vpop.permute.xlu0 %1137
      %1139 = vrot.lane.b32.xlu0 %v287, 90
      %v1140 = vpop.permute.xlu0 %1139
      %vm1141 = vcmask 736256
      %v1142 = vsel %vm1141, %v1136, %v1138
      %v1143 = vsel %vm1141, %v1138, %v1140
      %v1145 = vsel %vm303, %v1134, 0
      %v1148 = vsel %vm307, %v1142, 0
      %v1151 = vsel %vm307, %v1143, 0
      %v1154 = vsel %vm307, %v1140, 0
      %1156 = vmatprep.subr.bf16.mxu0 %v1151
      %1157 = vmatpush1.bf16.msra.mxu0 %v1148
      %1158 = vmatprep.subr.bf16.mxu0 0
      %1159 = vmatpush1.bf16.msra.mxu0 0
      %1160 = vmatprep.subr.bf16.mxu0 0
      %1161 = vmatpush1.bf16.msra.mxu0 0
      %1162 = vmatprep.subr.bf16.mxu0 0
      %1163 = vmatpush1.bf16.msra.mxu0 0
      %1164 = vmatprep.subr.bf16.mxu0 0
      %1165 = vmatpush1.bf16.msra.mxu0 0
      %1166 = vmatprep.subr.bf16.mxu0 0
      %1167 = vmatpush1.bf16.msra.mxu0 0
      %1168 = vmatprep.subr.bf16.mxu0 0
      %1169 = vmatpush1.bf16.msra.mxu0 0
      %1170 = vmatprep.subr.bf16.mxu0 0
      %1171 = vmatpush1.bf16.msra.mxu0 0
      %1172 = vmatprep.subr.bf16.mxu0 0
      %1173 = vmatpush1.bf16.msra.mxu0 0
      %1174 = vmatprep.subr.bf16.mxu0 0
      %1175 = vmatpush1.bf16.msra.mxu0 0
      %1176 = vmatprep.subr.bf16.mxu0 0
      %1177 = vmatpush1.bf16.msra.mxu0 0
      %1178 = vmatprep.subr.bf16.mxu0 0
      %1179 = vmatpush1.bf16.msra.mxu0 0
      %1180 = vmatprep.subr.bf16.mxu0 0
      %1181 = vmatpush1.bf16.msra.mxu0 0
      %1182 = vmatprep.subr.bf16.mxu0 0
      %1183 = vmatpush1.bf16.msra.mxu0 0
      %1184 = vmatprep.subr.bf16.mxu0 0
      %1185 = vmatpush1.bf16.msra.mxu0 0
      %1186 = vmatprep.subr.bf16.mxu0 0
      %1187 = vmatpush1.bf16.msra.mxu0 0
      %1188 = vmatprep.mubr.bf16.mxu0 0
      %1189 = vmatmul.mubr.bf16.gmra.mrb[0].mxu0 %v1145
      %v1190 = vpop.f32.mrb[0].mxu0
      %v1191 = vadd.f32 0.0, %v1190
      %v1192 = vpop.f32.mrb[0].mxu0
      %v1193 = vadd.f32 0.0, %v1192
      %v1194 = vpop.f32.mrb[0].mxu0
      %v1195 = vpop.f32.mrb[0].mxu0
      %1196 = vdwg.mxu0
      %1197 = vmatprep.subr.bf16.mxu0 0
      %1198 = vmatpush1.bf16.msra.mxu0 %v1154
      %1199 = vmatprep.subr.bf16.mxu0 0
      %1200 = vmatpush1.bf16.msra.mxu0 0
      %1201 = vmatprep.subr.bf16.mxu0 0
      %1202 = vmatpush1.bf16.msra.mxu0 0
      %1203 = vmatprep.subr.bf16.mxu0 0
      %1204 = vmatpush1.bf16.msra.mxu0 0
      %1205 = vmatprep.subr.bf16.mxu0 0
      %1206 = vmatpush1.bf16.msra.mxu0 0
      %1207 = vmatprep.subr.bf16.mxu0 0
      %1208 = vmatpush1.bf16.msra.mxu0 0
      %1209 = vmatprep.subr.bf16.mxu0 0
      %1210 = vmatpush1.bf16.msra.mxu0 0
      %1211 = vmatprep.subr.bf16.mxu0 0
      %1212 = vmatpush1.bf16.msra.mxu0 0
      %1213 = vmatprep.subr.bf16.mxu0 0
      %1214 = vmatpush1.bf16.msra.mxu0 0
      %1215 = vmatprep.subr.bf16.mxu0 0
      %1216 = vmatpush1.bf16.msra.mxu0 0
      %1217 = vmatprep.subr.bf16.mxu0 0
      %1218 = vmatpush1.bf16.msra.mxu0 0
      %1219 = vmatprep.subr.bf16.mxu0 0
      %1220 = vmatpush1.bf16.msra.mxu0 0
      %1221 = vmatprep.subr.bf16.mxu0 0
      %1222 = vmatpush1.bf16.msra.mxu0 0
      %1223 = vmatprep.subr.bf16.mxu0 0
      %1224 = vmatpush1.bf16.msra.mxu0 0
      %1225 = vmatprep.subr.bf16.mxu0 0
      %1226 = vmatpush1.bf16.msra.mxu0 0
      %1227 = vmatprep.subr.bf16.mxu0 0
      %1228 = vmatpush1.bf16.msra.mxu0 0
      %1229 = vmatprep.mubr.bf16.mxu0 0
      %1230 = vmatmul.mubr.bf16.gmra.mrb[0].mxu0 %v1145
      %v1231 = vpop.f32.mrb[0].mxu0
      %v1232 = vadd.f32 0.0, %v1231
      %v1233 = vpop.f32.mrb[0].mxu0
      %v1234 = vpop.f32.mrb[0].mxu0
      %v1235 = vpop.f32.mrb[0].mxu0
      %1236 = vdwg.mxu0
      %v1237 = vadd.f32 %v1130, %v1191
      %v1238 = vadd.f32 %v1131, %v1193
      %v1239 = vadd.f32 %v1132, %v1232
      %v1240 = vld [vmem:[%s2] sm:$0xff]
      %1242 = vset.pattern.permute.xlu0 0
      %1243 = vperm.xlu0 %1242, %v1240
      %v1244 = vpop.permute.xlu0 %1243
      %v1246 = vmul.f32 %v1237, %v1244
      %v1247 = vmul.f32 %v1238, %v1244
      %v1248 = vmul.f32 %v1239, %v1244
      %v1249 = vld [vmem:[%s3] sm:$0xff]
      %1251 = vset.pattern.permute.xlu0 0
      %1252 = vperm.xlu0 %1251, %v1249
      %v1253 = vpop.permute.xlu0 %1252
      %v1255 = vadd.f32 %v1246, %v1253
      %v1256 = vadd.f32 %v1247, %v1253
      %v1257 = vadd.f32 %v1248, %v1253
      %v1258 = vmax.f32 %v1255, 0.0
      %v1259 = vmax.f32 %v1256, 0.0
      %v1260 = vmax.f32 %v1257, 0.0
      %v1261 = vpack.c.bf16 %v1258, %v1258
      %v1262 = vpack.c.bf16 %v1259, %v1259
      %v1263 = vpack.c.bf16 %v1260, %v1260
      %1264 = vst [vmem:[#allocation2] sm:$0xff] 0
      %vm1265 = vcmask 699392
      %1266 = vst.msk [vmem:[#allocation2 + $0x8] sm:$0xf] %vm1265, 0
      %v1268 = vunpack.c.l.b16 %v1261
      %v1269 = vpack.c.b16 %v1268, %v1268
      %1270 = vrot.lane.b32.xlu0 %v1269, 19
      %v1271 = vpop.permute.xlu0 %1270
      %vm1273 = vcmask 281752
      %1274 = vst.msk [vmem:[#allocation2] sm:$0xf] %vm1273, %v1271
      %vm1275 = vcmask 429352
      %1276 = vst.msk [vmem:[#allocation2] sm:$0xf] %vm1275, %v1271
      %vm1277 = vcmask 576952
      %1278 = vst.msk [vmem:[#allocation2] sm:$0xf] %vm1277, %v1271
      %vm1279 = vcmask 724552
      %1280 = vst.msk [vmem:[#allocation2] sm:$0xf] %vm1279, %v1271
      %vm1281 = vcmask 872152
      %1282 = vst.msk [vmem:[#allocation2] sm:$0xf] %vm1281, %v1271
      %vm1283 = vcmask 1019752
      %1284 = vst.msk [vmem:[#allocation2] sm:$0xf] %vm1283, %v1271
      %v1285 = vrot.slane %v1271, 4
      %vm1286 = vcmask 154624
      %v1287 = vsel %vm1286, %v1285, %v1271
      %vm1289 = vcmask 1044472
      %vm1290 = vcmask 121860
      %vm1291 = vmor %vm1290, %vm1289
      %1292 = vst.msk [vmem:[#allocation2] sm:$0xff] %vm1291, %v1287
      %v1294 = vunpack.c.l.b16 %v1262
      %v1295 = vpack.c.b16 %v1294, %v1268
      %1296 = vrot.lane.b32.xlu0 %v1295, 19
      %v1297 = vpop.permute.xlu0 %1296
      %v1298 = vrot.slane %v1297, 4
      %v1299 = vsel %vm1286, %v1297, %v1298
      %vm1301 = vcmask 265352
      %1302 = vst.msk [vmem:[#allocation2 + $0x4] sm:$0xf] %vm1301, %v1299
      %v1303 = vpack.c.b16 %v1294, %v1294
      %1304 = vrot.lane.b32.xlu0 %v1303, 19
      %v1305 = vpop.permute.xlu0 %1304
      %vm1307 = vcmask 412952
      %1308 = vst.msk [vmem:[#allocation2 + $0x4] sm:$0xf] %vm1307, %v1305
      %vm1309 = vcmask 560552
      %1310 = vst.msk [vmem:[#allocation2 + $0x4] sm:$0xf] %vm1309, %v1305
      %vm1311 = vcmask 708152
      %1312 = vst.msk [vmem:[#allocation2 + $0x4] sm:$0xf] %vm1311, %v1305
      %vm1313 = vcmask 855752
      %1314 = vst.msk [vmem:[#allocation2 + $0x4] sm:$0xf] %vm1313, %v1305
      %vm1315 = vcmask 1003352
      %1316 = vst.msk [vmem:[#allocation2 + $0x4] sm:$0xf] %vm1315, %v1305
      %v1317 = vrot.slane %v1305, 4
      %v1318 = vsel %vm1286, %v1317, %v1305
      %vm1320 = vcmask 1044456
      %vm1321 = vcmask 105476
      %vm1322 = vmor %vm1321, %vm1320
      %1323 = vst.msk [vmem:[#allocation2 + $0x4] sm:$0xff] %vm1322, %v1318
      %v1325 = vunpack.c.l.b16 %v1263
      %v1326 = vpack.c.b16 %v1325, %v1294
      %1327 = vrot.lane.b32.xlu0 %v1326, 19
      %v1328 = vpop.permute.xlu0 %1327
      %v1329 = vrot.slane %v1328, 4
      %v1330 = vsel %vm1286, %v1328, %v1329
      %vm1332 = vcmask 248952
      %1333 = vst.msk [vmem:[#allocation2 + $0x8] sm:$0xf] %vm1332, %v1330
      %v1334 = vpack.c.b16 %v1325, %v1325
      %1335 = vrot.lane.b32.xlu0 %v1334, 19
      %v1336 = vpop.permute.xlu0 %1335
      %vm1338 = vcmask 396552
      %1339 = vst.msk [vmem:[#allocation2 + $0x8] sm:$0xf] %vm1338, %v1336
      %v1340 = vld [vmem:[#allocation2] sm:$0xff]
      %v1341 = vld [vmem:[#allocation2 + $0x8] sm:$0xf]
      %v1342 = vld [vmem:[%s4] sm:$0xf]
      %s1343 = scalar_lea.vmem %s4, 4
      %v1344 = vld [vmem:[%s1343] sm:$0xf]
      %v1347 = vunpack.c.l.b16 %v1340
      %v1348 = vunpack.c.h.b16 %v1340
      %v1349 = vunpack.c.l.b16 %v1341
      %v1350 = vpack.c.b16 %v1347, %v1347
      %v1351 = vpack.c.b16 %v1348, %v1348
      %v1352 = vpack.c.b16 %v1349, %v1349
      %1353 = vrot.lane.b32.xlu0 %v1350, 127
      %v1354 = vpop.permute.xlu0 %1353
      %1355 = vrot.lane.b32.xlu0 %v1351, 127
      %v1356 = vpop.permute.xlu0 %1355
      %1357 = vrot.lane.b32.xlu0 %v1352, 127
      %v1358 = vpop.permute.xlu0 %1357
      %v1359 = vsel %vm300, %v1354, %v1356
      %v1360 = vsel %vm300, %v1356, %v1358
      %vm1361 = vcmask 64512
      %v1363 = vsel %vm1361, %v1344, 0
      %vm1365 = vcmask 1043456
      %v1367 = vsel %vm1365, %v1359, 0
      %v1370 = vsel %vm1365, %v1360, 0
      %v1373 = vsel %vm1365, %v1358, 0
      %1375 = vmatprep.subr.bf16.mxu0 %v1370
      %1376 = vmatpush1.bf16.msra.mxu0 %v1367
      %1377 = vmatprep.subr.bf16.mxu0 0
      %1378 = vmatpush1.bf16.msra.mxu0 0
      %1379 = vmatprep.subr.bf16.mxu0 0
      %1380 = vmatpush1.bf16.msra.mxu0 0
      %1381 = vmatprep.subr.bf16.mxu0 0
      %1382 = vmatpush1.bf16.msra.mxu0 0
      %1383 = vmatprep.subr.bf16.mxu0 0
      %1384 = vmatpush1.bf16.msra.mxu0 0
      %1385 = vmatprep.subr.bf16.mxu0 0
      %1386 = vmatpush1.bf16.msra.mxu0 0
      %1387 = vmatprep.subr.bf16.mxu0 0
      %1388 = vmatpush1.bf16.msra.mxu0 0
      %1389 = vmatprep.subr.bf16.mxu0 0
      %1390 = vmatpush1.bf16.msra.mxu0 0
      %1391 = vmatprep.subr.bf16.mxu0 0
      %1392 = vmatpush1.bf16.msra.mxu0 0
      %1393 = vmatprep.subr.bf16.mxu0 0
      %1394 = vmatpush1.bf16.msra.mxu0 0
      %1395 = vmatprep.subr.bf16.mxu0 0
      %1396 = vmatpush1.bf16.msra.mxu0 0
      %1397 = vmatprep.subr.bf16.mxu0 0
      %1398 = vmatpush1.bf16.msra.mxu0 0
      %1399 = vmatprep.subr.bf16.mxu0 0
      %1400 = vmatpush1.bf16.msra.mxu0 0
      %1401 = vmatprep.subr.bf16.mxu0 0
      %1402 = vmatpush1.bf16.msra.mxu0 0
      %1403 = vmatprep.subr.bf16.mxu0 0
      %1404 = vmatpush1.bf16.msra.mxu0 0
      %1405 = vmatprep.subr.bf16.mxu0 0
      %1406 = vmatpush1.bf16.msra.mxu0 0
      %1407 = vmatprep.mubr.bf16.mxu0 0
      %1408 = vmatmul.mubr.bf16.gmra.mrb[0].mxu0 %v1363
      %v1409 = vpop.f32.mrb[0].mxu0
      %v1410 = vadd.f32 0.0, %v1409
      %v1411 = vpop.f32.mrb[0].mxu0
      %v1412 = vadd.f32 0.0, %v1411
      %v1413 = vpop.f32.mrb[0].mxu0
      %v1414 = vpop.f32.mrb[0].mxu0
      %1415 = vdwg.mxu0
      %1416 = vmatprep.subr.bf16.mxu0 0
      %1417 = vmatpush1.bf16.msra.mxu0 %v1373
      %1418 = vmatprep.subr.bf16.mxu0 0
      %1419 = vmatpush1.bf16.msra.mxu0 0
      %1420 = vmatprep.subr.bf16.mxu0 0
      %1421 = vmatpush1.bf16.msra.mxu0 0
      %1422 = vmatprep.subr.bf16.mxu0 0
      %1423 = vmatpush1.bf16.msra.mxu0 0
      %1424 = vmatprep.subr.bf16.mxu0 0
      %1425 = vmatpush1.bf16.msra.mxu0 0
      %1426 = vmatprep.subr.bf16.mxu0 0
      %1427 = vmatpush1.bf16.msra.mxu0 0
      %1428 = vmatprep.subr.bf16.mxu0 0
      %1429 = vmatpush1.bf16.msra.mxu0 0
      %1430 = vmatprep.subr.bf16.mxu0 0
      %1431 = vmatpush1.bf16.msra.mxu0 0
      %1432 = vmatprep.subr.bf16.mxu0 0
      %1433 = vmatpush1.bf16.msra.mxu0 0
      %1434 = vmatprep.subr.bf16.mxu0 0
      %1435 = vmatpush1.bf16.msra.mxu0 0
      %1436 = vmatprep.subr.bf16.mxu0 0
      %1437 = vmatpush1.bf16.msra.mxu0 0
      %1438 = vmatprep.subr.bf16.mxu0 0
      %1439 = vmatpush1.bf16.msra.mxu0 0
      %1440 = vmatprep.subr.bf16.mxu0 0
      %1441 = vmatpush1.bf16.msra.mxu0 0
      %1442 = vmatprep.subr.bf16.mxu0 0
      %1443 = vmatpush1.bf16.msra.mxu0 0
      %1444 = vmatprep.subr.bf16.mxu0 0
      %1445 = vmatpush1.bf16.msra.mxu0 0
      %1446 = vmatprep.subr.bf16.mxu0 0
      %1447 = vmatpush1.bf16.msra.mxu0 0
      %1448 = vmatprep.mubr.bf16.mxu0 0
      %1449 = vmatmul.mubr.bf16.gmra.mrb[0].mxu0 %v1363
      %v1450 = vpop.f32.mrb[0].mxu0
      %v1451 = vadd.f32 0.0, %v1450
      %v1452 = vpop.f32.mrb[0].mxu0
      %v1453 = vpop.f32.mrb[0].mxu0
      %v1454 = vpop.f32.mrb[0].mxu0
      %1455 = vdwg.mxu0
      %v1457 = vsel %vm1361, %v1342, 0
      %v1460 = vsel %vm1365, %v1350, 0
      %v1463 = vsel %vm1365, %v1351, 0
      %v1466 = vsel %vm1365, %v1352, 0
      %1468 = vmatprep.subr.bf16.mxu0 %v1463
      %1469 = vmatpush1.bf16.msra.mxu0 %v1460
      %1470 = vmatprep.subr.bf16.mxu0 0
      %1471 = vmatpush1.bf16.msra.mxu0 0
      %1472 = vmatprep.subr.bf16.mxu0 0
      %1473 = vmatpush1.bf16.msra.mxu0 0
      %1474 = vmatprep.subr.bf16.mxu0 0
      %1475 = vmatpush1.bf16.msra.mxu0 0
      %1476 = vmatprep.subr.bf16.mxu0 0
      %1477 = vmatpush1.bf16.msra.mxu0 0
      %1478 = vmatprep.subr.bf16.mxu0 0
      %1479 = vmatpush1.bf16.msra.mxu0 0
      %1480 = vmatprep.subr.bf16.mxu0 0
      %1481 = vmatpush1.bf16.msra.mxu0 0
      %1482 = vmatprep.subr.bf16.mxu0 0
      %1483 = vmatpush1.bf16.msra.mxu0 0
      %1484 = vmatprep.subr.bf16.mxu0 0
      %1485 = vmatpush1.bf16.msra.mxu0 0
      %1486 = vmatprep.subr.bf16.mxu0 0
      %1487 = vmatpush1.bf16.msra.mxu0 0
      %1488 = vmatprep.subr.bf16.mxu0 0
      %1489 = vmatpush1.bf16.msra.mxu0 0
      %1490 = vmatprep.subr.bf16.mxu0 0
      %1491 = vmatpush1.bf16.msra.mxu0 0
      %1492 = vmatprep.subr.bf16.mxu0 0
      %1493 = vmatpush1.bf16.msra.mxu0 0
      %1494 = vmatprep.subr.bf16.mxu0 0
      %1495 = vmatpush1.bf16.msra.mxu0 0
      %1496 = vmatprep.subr.bf16.mxu0 0
      %1497 = vmatpush1.bf16.msra.mxu0 0
      %1498 = vmatprep.subr.bf16.mxu0 0
      %1499 = vmatpush1.bf16.msra.mxu0 0
      %1500 = vmatprep.mubr.bf16.mxu0 0
      %1501 = vmatmul.mubr.bf16.gmra.mrb[0].mxu0 %v1457
      %v1502 = vpop.f32.mrb[0].mxu0
      %v1503 = vadd.f32 %v1410, %v1502
      %v1504 = vpop.f32.mrb[0].mxu0
      %v1505 = vadd.f32 %v1412, %v1504
      %v1506 = vpop.f32.mrb[0].mxu0
      %v1507 = vpop.f32.mrb[0].mxu0
      %1508 = vdwg.mxu0
      %1509 = vmatprep.subr.bf16.mxu0 0
      %1510 = vmatpush1.bf16.msra.mxu0 %v1466
      %1511 = vmatprep.subr.bf16.mxu0 0
      %1512 = vmatpush1.bf16.msra.mxu0 0
      %1513 = vmatprep.subr.bf16.mxu0 0
      %1514 = vmatpush1.bf16.msra.mxu0 0
      %1515 = vmatprep.subr.bf16.mxu0 0
      %1516 = vmatpush1.bf16.msra.mxu0 0
      %1517 = vmatprep.subr.bf16.mxu0 0
      %1518 = vmatpush1.bf16.msra.mxu0 0
      %1519 = vmatprep.subr.bf16.mxu0 0
      %1520 = vmatpush1.bf16.msra.mxu0 0
      %1521 = vmatprep.subr.bf16.mxu0 0
      %1522 = vmatpush1.bf16.msra.mxu0 0
      %1523 = vmatprep.subr.bf16.mxu0 0
      %1524 = vmatpush1.bf16.msra.mxu0 0
      %1525 = vmatprep.subr.bf16.mxu0 0
      %1526 = vmatpush1.bf16.msra.mxu0 0
      %1527 = vmatprep.subr.bf16.mxu0 0
      %1528 = vmatpush1.bf16.msra.mxu0 0
      %1529 = vmatprep.subr.bf16.mxu0 0
      %1530 = vmatpush1.bf16.msra.mxu0 0
      %1531 = vmatprep.subr.bf16.mxu0 0
      %1532 = vmatpush1.bf16.msra.mxu0 0
      %1533 = vmatprep.subr.bf16.mxu0 0
      %1534 = vmatpush1.bf16.msra.mxu0 0
      %1535 = vmatprep.subr.bf16.mxu0 0
      %1536 = vmatpush1.bf16.msra.mxu0 0
      %1537 = vmatprep.subr.bf16.mxu0 0
      %1538 = vmatpush1.bf16.msra.mxu0 0
      %1539 = vmatprep.subr.bf16.mxu0 0
      %1540 = vmatpush1.bf16.msra.mxu0 0
      %1541 = vmatprep.mubr.bf16.mxu0 0
      %1542 = vmatmul.mubr.bf16.gmra.mrb[0].mxu0 %v1457
      %v1543 = vpop.f32.mrb[0].mxu0
      %v1544 = vadd.f32 %v1451, %v1543
      %v1545 = vpop.f32.mrb[0].mxu0
      %v1546 = vpop.f32.mrb[0].mxu0
      %v1547 = vpop.f32.mrb[0].mxu0
      %1548 = vdwg.mxu0
      %s1549 = scalar_lea.vmem %s4, 8
      %v1550 = vld [vmem:[%s1549] sm:$0xf]
      %1551 = vrot.lane.b32.xlu0 %v1350, 126
      %v1552 = vpop.permute.xlu0 %1551
      %1553 = vrot.lane.b32.xlu0 %v1351, 126
      %v1554 = vpop.permute.xlu0 %1553
      %1555 = vrot.lane.b32.xlu0 %v1352, 126
      %v1556 = vpop.permute.xlu0 %1555
      %v1557 = vsel %vm499, %v1552, %v1554
      %v1558 = vsel %vm499, %v1554, %v1556
      %v1560 = vsel %vm1361, %v1550, 0
      %v1563 = vsel %vm1365, %v1557, 0
      %v1566 = vsel %vm1365, %v1558, 0
      %v1569 = vsel %vm1365, %v1556, 0
      %1571 = vmatprep.subr.bf16.mxu0 %v1566
      %1572 = vmatpush1.bf16.msra.mxu0 %v1563
      %1573 = vmatprep.subr.bf16.mxu0 0
      %1574 = vmatpush1.bf16.msra.mxu0 0
      %1575 = vmatprep.subr.bf16.mxu0 0
      %1576 = vmatpush1.bf16.msra.mxu0 0
      %1577 = vmatprep.subr.bf16.mxu0 0
      %1578 = vmatpush1.bf16.msra.mxu0 0
      %1579 = vmatprep.subr.bf16.mxu0 0
      %1580 = vmatpush1.bf16.msra.mxu0 0
      %1581 = vmatprep.subr.bf16.mxu0 0
      %1582 = vmatpush1.bf16.msra.mxu0 0
      %1583 = vmatprep.subr.bf16.mxu0 0
      %1584 = vmatpush1.bf16.msra.mxu0 0
      %1585 = vmatprep.subr.bf16.mxu0 0
      %1586 = vmatpush1.bf16.msra.mxu0 0
      %1587 = vmatprep.subr.bf16.mxu0 0
      %1588 = vmatpush1.bf16.msra.mxu0 0
      %1589 = vmatprep.subr.bf16.mxu0 0
      %1590 = vmatpush1.bf16.msra.mxu0 0
      %1591 = vmatprep.subr.bf16.mxu0 0
      %1592 = vmatpush1.bf16.msra.mxu0 0
      %1593 = vmatprep.subr.bf16.mxu0 0
      %1594 = vmatpush1.bf16.msra.mxu0 0
      %1595 = vmatprep.subr.bf16.mxu0 0
      %1596 = vmatpush1.bf16.msra.mxu0 0
      %1597 = vmatprep.subr.bf16.mxu0 0
      %1598 = vmatpush1.bf16.msra.mxu0 0
      %1599 = vmatprep.subr.bf16.mxu0 0
      %1600 = vmatpush1.bf16.msra.mxu0 0
      %1601 = vmatprep.subr.bf16.mxu0 0
      %1602 = vmatpush1.bf16.msra.mxu0 0
      %1603 = vmatprep.mubr.bf16.mxu0 0
      %1604 = vmatmul.mubr.bf16.gmra.mrb[0].mxu0 %v1560
      %v1605 = vpop.f32.mrb[0].mxu0
      %v1606 = vadd.f32 0.0, %v1605
      %v1607 = vpop.f32.mrb[0].mxu0
      %v1608 = vadd.f32 0.0, %v1607
      %v1609 = vpop.f32.mrb[0].mxu0
      %v1610 = vpop.f32.mrb[0].mxu0
      %1611 = vdwg.mxu0
      %1612 = vmatprep.subr.bf16.mxu0 0
      %1613 = vmatpush1.bf16.msra.mxu0 %v1569
      %1614 = vmatprep.subr.bf16.mxu0 0
      %1615 = vmatpush1.bf16.msra.mxu0 0
      %1616 = vmatprep.subr.bf16.mxu0 0
      %1617 = vmatpush1.bf16.msra.mxu0 0
      %1618 = vmatprep.subr.bf16.mxu0 0
      %1619 = vmatpush1.bf16.msra.mxu0 0
      %1620 = vmatprep.subr.bf16.mxu0 0
      %1621 = vmatpush1.bf16.msra.mxu0 0
      %1622 = vmatprep.subr.bf16.mxu0 0
      %1623 = vmatpush1.bf16.msra.mxu0 0
      %1624 = vmatprep.subr.bf16.mxu0 0
      %1625 = vmatpush1.bf16.msra.mxu0 0
      %1626 = vmatprep.subr.bf16.mxu0 0
      %1627 = vmatpush1.bf16.msra.mxu0 0
      %1628 = vmatprep.subr.bf16.mxu0 0
      %1629 = vmatpush1.bf16.msra.mxu0 0
      %1630 = vmatprep.subr.bf16.mxu0 0
      %1631 = vmatpush1.bf16.msra.mxu0 0
      %1632 = vmatprep.subr.bf16.mxu0 0
      %1633 = vmatpush1.bf16.msra.mxu0 0
      %1634 = vmatprep.subr.bf16.mxu0 0
      %1635 = vmatpush1.bf16.msra.mxu0 0
      %1636 = vmatprep.subr.bf16.mxu0 0
      %1637 = vmatpush1.bf16.msra.mxu0 0
      %1638 = vmatprep.subr.bf16.mxu0 0
      %1639 = vmatpush1.bf16.msra.mxu0 0
      %1640 = vmatprep.subr.bf16.mxu0 0
      %1641 = vmatpush1.bf16.msra.mxu0 0
      %1642 = vmatprep.subr.bf16.mxu0 0
      %1643 = vmatpush1.bf16.msra.mxu0 0
      %1644 = vmatprep.mubr.bf16.mxu0 0
      %1645 = vmatmul.mubr.bf16.gmra.mrb[0].mxu0 %v1560
      %v1646 = vpop.f32.mrb[0].mxu0
      %v1647 = vadd.f32 0.0, %v1646
      %v1648 = vpop.f32.mrb[0].mxu0
      %v1649 = vpop.f32.mrb[0].mxu0
      %v1650 = vpop.f32.mrb[0].mxu0
      %1651 = vdwg.mxu0
      %v1652 = vadd.f32 %v1503, %v1606
      %v1653 = vadd.f32 %v1505, %v1608
      %v1654 = vadd.f32 %v1544, %v1647
      %s1655 = scalar_lea.vmem %s4, 12
      %v1656 = vld [vmem:[%s1655] sm:$0xf]
      %1657 = vrot.lane.b32.xlu0 %v1350, 110
      %v1658 = vpop.permute.xlu0 %1657
      %1659 = vrot.lane.b32.xlu0 %v1351, 110
      %v1660 = vpop.permute.xlu0 %1659
      %1661 = vrot.lane.b32.xlu0 %v1352, 110
      %v1662 = vpop.permute.xlu0 %1661
      %v1663 = vsel %vm606, %v1658, %v1660
      %v1664 = vsel %vm606, %v1660, %v1662
      %v1666 = vsel %vm1361, %v1656, 0
      %v1669 = vsel %vm1365, %v1663, 0
      %v1672 = vsel %vm1365, %v1664, 0
      %v1675 = vsel %vm1365, %v1662, 0
      %1677 = vmatprep.subr.bf16.mxu0 %v1672
      %1678 = vmatpush1.bf16.msra.mxu0 %v1669
      %1679 = vmatprep.subr.bf16.mxu0 0
      %1680 = vmatpush1.bf16.msra.mxu0 0
      %1681 = vmatprep.subr.bf16.mxu0 0
      %1682 = vmatpush1.bf16.msra.mxu0 0
      %1683 = vmatprep.subr.bf16.mxu0 0
      %1684 = vmatpush1.bf16.msra.mxu0 0
      %1685 = vmatprep.subr.bf16.mxu0 0
      %1686 = vmatpush1.bf16.msra.mxu0 0
      %1687 = vmatprep.subr.bf16.mxu0 0
      %1688 = vmatpush1.bf16.msra.mxu0 0
      %1689 = vmatprep.subr.bf16.mxu0 0
      %1690 = vmatpush1.bf16.msra.mxu0 0
      %1691 = vmatprep.subr.bf16.mxu0 0
      %1692 = vmatpush1.bf16.msra.mxu0 0
      %1693 = vmatprep.subr.bf16.mxu0 0
      %1694 = vmatpush1.bf16.msra.mxu0 0
      %1695 = vmatprep.subr.bf16.mxu0 0
      %1696 = vmatpush1.bf16.msra.mxu0 0
      %1697 = vmatprep.subr.bf16.mxu0 0
      %1698 = vmatpush1.bf16.msra.mxu0 0
      %1699 = vmatprep.subr.bf16.mxu0 0
      %1700 = vmatpush1.bf16.msra.mxu0 0
      %1701 = vmatprep.subr.bf16.mxu0 0
      %1702 = vmatpush1.bf16.msra.mxu0 0
      %1703 = vmatprep.subr.bf16.mxu0 0
      %1704 = vmatpush1.bf16.msra.mxu0 0
      %1705 = vmatprep.subr.bf16.mxu0 0
      %1706 = vmatpush1.bf16.msra.mxu0 0
      %1707 = vmatprep.subr.bf16.mxu0 0
      %1708 = vmatpush1.bf16.msra.mxu0 0
      %1709 = vmatprep.mubr.bf16.mxu0 0
      %1710 = vmatmul.mubr.bf16.gmra.mrb[0].mxu0 %v1666
      %v1711 = vpop.f32.mrb[0].mxu0
      %v1712 = vadd.f32 0.0, %v1711
      %v1713 = vpop.f32.mrb[0].mxu0
      %v1714 = vadd.f32 0.0, %v1713
      %v1715 = vpop.f32.mrb[0].mxu0
      %v1716 = vpop.f32.mrb[0].mxu0
      %1717 = vdwg.mxu0
      %1718 = vmatprep.subr.bf16.mxu0 0
      %1719 = vmatpush1.bf16.msra.mxu0 %v1675
      %1720 = vmatprep.subr.bf16.mxu0 0
      %1721 = vmatpush1.bf16.msra.mxu0 0
      %1722 = vmatprep.subr.bf16.mxu0 0
      %1723 = vmatpush1.bf16.msra.mxu0 0
      %1724 = vmatprep.subr.bf16.mxu0 0
      %1725 = vmatpush1.bf16.msra.mxu0 0
      %1726 = vmatprep.subr.bf16.mxu0 0
      %1727 = vmatpush1.bf16.msra.mxu0 0
      %1728 = vmatprep.subr.bf16.mxu0 0
      %1729 = vmatpush1.bf16.msra.mxu0 0
      %1730 = vmatprep.subr.bf16.mxu0 0
      %1731 = vmatpush1.bf16.msra.mxu0 0
      %1732 = vmatprep.subr.bf16.mxu0 0
      %1733 = vmatpush1.bf16.msra.mxu0 0
      %1734 = vmatprep.subr.bf16.mxu0 0
      %1735 = vmatpush1.bf16.msra.mxu0 0
      %1736 = vmatprep.subr.bf16.mxu0 0
      %1737 = vmatpush1.bf16.msra.mxu0 0
      %1738 = vmatprep.subr.bf16.mxu0 0
      %1739 = vmatpush1.bf16.msra.mxu0 0
      %1740 = vmatprep.subr.bf16.mxu0 0
      %1741 = vmatpush1.bf16.msra.mxu0 0
      %1742 = vmatprep.subr.bf16.mxu0 0
      %1743 = vmatpush1.bf16.msra.mxu0 0
      %1744 = vmatprep.subr.bf16.mxu0 0
      %1745 = vmatpush1.bf16.msra.mxu0 0
      %1746 = vmatprep.subr.bf16.mxu0 0
      %1747 = vmatpush1.bf16.msra.mxu0 0
      %1748 = vmatprep.subr.bf16.mxu0 0
      %1749 = vmatpush1.bf16.msra.mxu0 0
      %1750 = vmatprep.mubr.bf16.mxu0 0
      %1751 = vmatmul.mubr.bf16.gmra.mrb[0].mxu0 %v1666
      %v1752 = vpop.f32.mrb[0].mxu0
      %v1753 = vadd.f32 0.0, %v1752
      %v1754 = vpop.f32.mrb[0].mxu0
      %v1755 = vpop.f32.mrb[0].mxu0
      %v1756 = vpop.f32.mrb[0].mxu0
      %1757 = vdwg.mxu0
      %v1758 = vadd.f32 %v1652, %v1712
      %v1759 = vadd.f32 %v1653, %v1714
      %v1760 = vadd.f32 %v1654, %v1753
      %s1761 = scalar_lea.vmem %s4, 16
      %v1762 = vld [vmem:[%s1761] sm:$0xf]
      %1763 = vrot.lane.b32.xlu0 %v1350, 109
      %v1764 = vpop.permute.xlu0 %1763
      %1765 = vrot.lane.b32.xlu0 %v1351, 109
      %v1766 = vpop.permute.xlu0 %1765
      %1767 = vrot.lane.b32.xlu0 %v1352, 109
      %v1768 = vpop.permute.xlu0 %1767
      %v1769 = vsel %vm713, %v1764, %v1766
      %v1770 = vsel %vm713, %v1766, %v1768
      %v1772 = vsel %vm1361, %v1762, 0
      %v1775 = vsel %vm1365, %v1769, 0
      %v1778 = vsel %vm1365, %v1770, 0
      %v1781 = vsel %vm1365, %v1768, 0
      %1783 = vmatprep.subr.bf16.mxu0 %v1778
      %1784 = vmatpush1.bf16.msra.mxu0 %v1775
      %1785 = vmatprep.subr.bf16.mxu0 0
      %1786 = vmatpush1.bf16.msra.mxu0 0
      %1787 = vmatprep.subr.bf16.mxu0 0
      %1788 = vmatpush1.bf16.msra.mxu0 0
      %1789 = vmatprep.subr.bf16.mxu0 0
      %1790 = vmatpush1.bf16.msra.mxu0 0
      %1791 = vmatprep.subr.bf16.mxu0 0
      %1792 = vmatpush1.bf16.msra.mxu0 0
      %1793 = vmatprep.subr.bf16.mxu0 0
      %1794 = vmatpush1.bf16.msra.mxu0 0
      %1795 = vmatprep.subr.bf16.mxu0 0
      %1796 = vmatpush1.bf16.msra.mxu0 0
      %1797 = vmatprep.subr.bf16.mxu0 0
      %1798 = vmatpush1.bf16.msra.mxu0 0
      %1799 = vmatprep.subr.bf16.mxu0 0
      %1800 = vmatpush1.bf16.msra.mxu0 0
      %1801 = vmatprep.subr.bf16.mxu0 0
      %1802 = vmatpush1.bf16.msra.mxu0 0
      %1803 = vmatprep.subr.bf16.mxu0 0
      %1804 = vmatpush1.bf16.msra.mxu0 0
      %1805 = vmatprep.subr.bf16.mxu0 0
      %1806 = vmatpush1.bf16.msra.mxu0 0
      %1807 = vmatprep.subr.bf16.mxu0 0
      %1808 = vmatpush1.bf16.msra.mxu0 0
      %1809 = vmatprep.subr.bf16.mxu0 0
      %1810 = vmatpush1.bf16.msra.mxu0 0
      %1811 = vmatprep.subr.bf16.mxu0 0
      %1812 = vmatpush1.bf16.msra.mxu0 0
      %1813 = vmatprep.subr.bf16.mxu0 0
      %1814 = vmatpush1.bf16.msra.mxu0 0
      %1815 = vmatprep.mubr.bf16.mxu0 0
      %1816 = vmatmul.mubr.bf16.gmra.mrb[0].mxu0 %v1772
      %v1817 = vpop.f32.mrb[0].mxu0
      %v1818 = vadd.f32 0.0, %v1817
      %v1819 = vpop.f32.mrb[0].mxu0
      %v1820 = vadd.f32 0.0, %v1819
      %v1821 = vpop.f32.mrb[0].mxu0
      %v1822 = vpop.f32.mrb[0].mxu0
      %1823 = vdwg.mxu0
      %1824 = vmatprep.subr.bf16.mxu0 0
      %1825 = vmatpush1.bf16.msra.mxu0 %v1781
      %1826 = vmatprep.subr.bf16.mxu0 0
      %1827 = vmatpush1.bf16.msra.mxu0 0
      %1828 = vmatprep.subr.bf16.mxu0 0
      %1829 = vmatpush1.bf16.msra.mxu0 0
      %1830 = vmatprep.subr.bf16.mxu0 0
      %1831 = vmatpush1.bf16.msra.mxu0 0
      %1832 = vmatprep.subr.bf16.mxu0 0
      %1833 = vmatpush1.bf16.msra.mxu0 0
      %1834 = vmatprep.subr.bf16.mxu0 0
      %1835 = vmatpush1.bf16.msra.mxu0 0
      %1836 = vmatprep.subr.bf16.mxu0 0
      %1837 = vmatpush1.bf16.msra.mxu0 0
      %1838 = vmatprep.subr.bf16.mxu0 0
      %1839 = vmatpush1.bf16.msra.mxu0 0
      %1840 = vmatprep.subr.bf16.mxu0 0
      %1841 = vmatpush1.bf16.msra.mxu0 0
      %1842 = vmatprep.subr.bf16.mxu0 0
      %1843 = vmatpush1.bf16.msra.mxu0 0
      %1844 = vmatprep.subr.bf16.mxu0 0
      %1845 = vmatpush1.bf16.msra.mxu0 0
      %1846 = vmatprep.subr.bf16.mxu0 0
      %1847 = vmatpush1.bf16.msra.mxu0 0
      %1848 = vmatprep.subr.bf16.mxu0 0
      %1849 = vmatpush1.bf16.msra.mxu0 0
      %1850 = vmatprep.subr.bf16.mxu0 0
      %1851 = vmatpush1.bf16.msra.mxu0 0
      %1852 = vmatprep.subr.bf16.mxu0 0
      %1853 = vmatpush1.bf16.msra.mxu0 0
      %1854 = vmatprep.subr.bf16.mxu0 0
      %1855 = vmatpush1.bf16.msra.mxu0 0
      %1856 = vmatprep.mubr.bf16.mxu0 0
      %1857 = vmatmul.mubr.bf16.gmra.mrb[0].mxu0 %v1772
      %v1858 = vpop.f32.mrb[0].mxu0
      %v1859 = vadd.f32 0.0, %v1858
      %v1860 = vpop.f32.mrb[0].mxu0
      %v1861 = vpop.f32.mrb[0].mxu0
      %v1862 = vpop.f32.mrb[0].mxu0
      %1863 = vdwg.mxu0
      %v1864 = vadd.f32 %v1758, %v1818
      %v1865 = vadd.f32 %v1759, %v1820
      %v1866 = vadd.f32 %v1760, %v1859
      %s1867 = scalar_lea.vmem %s4, 20
      %v1868 = vld [vmem:[%s1867] sm:$0xf]
      %1869 = vrot.lane.b32.xlu0 %v1350, 108
      %v1870 = vpop.permute.xlu0 %1869
      %1871 = vrot.lane.b32.xlu0 %v1351, 108
      %v1872 = vpop.permute.xlu0 %1871
      %1873 = vrot.lane.b32.xlu0 %v1352, 108
      %v1874 = vpop.permute.xlu0 %1873
      %v1875 = vsel %vm820, %v1870, %v1872
      %v1876 = vsel %vm820, %v1872, %v1874
      %v1878 = vsel %vm1361, %v1868, 0
      %v1881 = vsel %vm1365, %v1875, 0
      %v1884 = vsel %vm1365, %v1876, 0
      %v1887 = vsel %vm1365, %v1874, 0
      %1889 = vmatprep.subr.bf16.mxu0 %v1884
      %1890 = vmatpush1.bf16.msra.mxu0 %v1881
      %1891 = vmatprep.subr.bf16.mxu0 0
      %1892 = vmatpush1.bf16.msra.mxu0 0
      %1893 = vmatprep.subr.bf16.mxu0 0
      %1894 = vmatpush1.bf16.msra.mxu0 0
      %1895 = vmatprep.subr.bf16.mxu0 0
      %1896 = vmatpush1.bf16.msra.mxu0 0
      %1897 = vmatprep.subr.bf16.mxu0 0
      %1898 = vmatpush1.bf16.msra.mxu0 0
      %1899 = vmatprep.subr.bf16.mxu0 0
      %1900 = vmatpush1.bf16.msra.mxu0 0
      %1901 = vmatprep.subr.bf16.mxu0 0
      %1902 = vmatpush1.bf16.msra.mxu0 0
      %1903 = vmatprep.subr.bf16.mxu0 0
      %1904 = vmatpush1.bf16.msra.mxu0 0
      %1905 = vmatprep.subr.bf16.mxu0 0
      %1906 = vmatpush1.bf16.msra.mxu0 0
      %1907 = vmatprep.subr.bf16.mxu0 0
      %1908 = vmatpush1.bf16.msra.mxu0 0
      %1909 = vmatprep.subr.bf16.mxu0 0
      %1910 = vmatpush1.bf16.msra.mxu0 0
      %1911 = vmatprep.subr.bf16.mxu0 0
      %1912 = vmatpush1.bf16.msra.mxu0 0
      %1913 = vmatprep.subr.bf16.mxu0 0
      %1914 = vmatpush1.bf16.msra.mxu0 0
      %1915 = vmatprep.subr.bf16.mxu0 0
      %1916 = vmatpush1.bf16.msra.mxu0 0
      %1917 = vmatprep.subr.bf16.mxu0 0
      %1918 = vmatpush1.bf16.msra.mxu0 0
      %1919 = vmatprep.subr.bf16.mxu0 0
      %1920 = vmatpush1.bf16.msra.mxu0 0
      %1921 = vmatprep.mubr.bf16.mxu0 0
      %1922 = vmatmul.mubr.bf16.gmra.mrb[0].mxu0 %v1878
      %v1923 = vpop.f32.mrb[0].mxu0
      %v1924 = vadd.f32 0.0, %v1923
      %v1925 = vpop.f32.mrb[0].mxu0
      %v1926 = vadd.f32 0.0, %v1925
      %v1927 = vpop.f32.mrb[0].mxu0
      %v1928 = vpop.f32.mrb[0].mxu0
      %1929 = vdwg.mxu0
      %1930 = vmatprep.subr.bf16.mxu0 0
      %1931 = vmatpush1.bf16.msra.mxu0 %v1887
      %1932 = vmatprep.subr.bf16.mxu0 0
      %1933 = vmatpush1.bf16.msra.mxu0 0
      %1934 = vmatprep.subr.bf16.mxu0 0
      %1935 = vmatpush1.bf16.msra.mxu0 0
      %1936 = vmatprep.subr.bf16.mxu0 0
      %1937 = vmatpush1.bf16.msra.mxu0 0
      %1938 = vmatprep.subr.bf16.mxu0 0
      %1939 = vmatpush1.bf16.msra.mxu0 0
      %1940 = vmatprep.subr.bf16.mxu0 0
      %1941 = vmatpush1.bf16.msra.mxu0 0
      %1942 = vmatprep.subr.bf16.mxu0 0
      %1943 = vmatpush1.bf16.msra.mxu0 0
      %1944 = vmatprep.subr.bf16.mxu0 0
      %1945 = vmatpush1.bf16.msra.mxu0 0
      %1946 = vmatprep.subr.bf16.mxu0 0
      %1947 = vmatpush1.bf16.msra.mxu0 0
      %1948 = vmatprep.subr.bf16.mxu0 0
      %1949 = vmatpush1.bf16.msra.mxu0 0
      %1950 = vmatprep.subr.bf16.mxu0 0
      %1951 = vmatpush1.bf16.msra.mxu0 0
      %1952 = vmatprep.subr.bf16.mxu0 0
      %1953 = vmatpush1.bf16.msra.mxu0 0
      %1954 = vmatprep.subr.bf16.mxu0 0
      %1955 = vmatpush1.bf16.msra.mxu0 0
      %1956 = vmatprep.subr.bf16.mxu0 0
      %1957 = vmatpush1.bf16.msra.mxu0 0
      %1958 = vmatprep.subr.bf16.mxu0 0
      %1959 = vmatpush1.bf16.msra.mxu0 0
      %1960 = vmatprep.subr.bf16.mxu0 0
      %1961 = vmatpush1.bf16.msra.mxu0 0
      %1962 = vmatprep.mubr.bf16.mxu0 0
      %1963 = vmatmul.mubr.bf16.gmra.mrb[0].mxu0 %v1878
      %v1964 = vpop.f32.mrb[0].mxu0
      %v1965 = vadd.f32 0.0, %v1964
      %v1966 = vpop.f32.mrb[0].mxu0
      %v1967 = vpop.f32.mrb[0].mxu0
      %v1968 = vpop.f32.mrb[0].mxu0
      %1969 = vdwg.mxu0
      %v1970 = vadd.f32 %v1864, %v1924
      %v1971 = vadd.f32 %v1865, %v1926
      %v1972 = vadd.f32 %v1866, %v1965
      %s1973 = scalar_lea.vmem %s4, 24
      %v1974 = vld [vmem:[%s1973] sm:$0xf]
      %1975 = vrot.lane.b32.xlu0 %v1350, 92
      %v1976 = vpop.permute.xlu0 %1975
      %1977 = vrot.lane.b32.xlu0 %v1351, 92
      %v1978 = vpop.permute.xlu0 %1977
      %1979 = vrot.lane.b32.xlu0 %v1352, 92
      %v1980 = vpop.permute.xlu0 %1979
      %v1981 = vsel %vm927, %v1976, %v1978
      %v1982 = vsel %vm927, %v1978, %v1980
      %v1984 = vsel %vm1361, %v1974, 0
      %v1987 = vsel %vm1365, %v1981, 0
      %v1990 = vsel %vm1365, %v1982, 0
      %v1993 = vsel %vm1365, %v1980, 0
      %1995 = vmatprep.subr.bf16.mxu0 %v1990
      %1996 = vmatpush1.bf16.msra.mxu0 %v1987
      %1997 = vmatprep.subr.bf16.mxu0 0
      %1998 = vmatpush1.bf16.msra.mxu0 0
      %1999 = vmatprep.subr.bf16.mxu0 0
      %2000 = vmatpush1.bf16.msra.mxu0 0
      %2001 = vmatprep.subr.bf16.mxu0 0
      %2002 = vmatpush1.bf16.msra.mxu0 0
      %2003 = vmatprep.subr.bf16.mxu0 0
      %2004 = vmatpush1.bf16.msra.mxu0 0
      %2005 = vmatprep.subr.bf16.mxu0 0
      %2006 = vmatpush1.bf16.msra.mxu0 0
      %2007 = vmatprep.subr.bf16.mxu0 0
      %2008 = vmatpush1.bf16.msra.mxu0 0
      %2009 = vmatprep.subr.bf16.mxu0 0
      %2010 = vmatpush1.bf16.msra.mxu0 0
      %2011 = vmatprep.subr.bf16.mxu0 0
      %2012 = vmatpush1.bf16.msra.mxu0 0
      %2013 = vmatprep.subr.bf16.mxu0 0
      %2014 = vmatpush1.bf16.msra.mxu0 0
      %2015 = vmatprep.subr.bf16.mxu0 0
      %2016 = vmatpush1.bf16.msra.mxu0 0
      %2017 = vmatprep.subr.bf16.mxu0 0
      %2018 = vmatpush1.bf16.msra.mxu0 0
      %2019 = vmatprep.subr.bf16.mxu0 0
      %2020 = vmatpush1.bf16.msra.mxu0 0
      %2021 = vmatprep.subr.bf16.mxu0 0
      %2022 = vmatpush1.bf16.msra.mxu0 0
      %2023 = vmatprep.subr.bf16.mxu0 0
      %2024 = vmatpush1.bf16.msra.mxu0 0
      %2025 = vmatprep.subr.bf16.mxu0 0
      %2026 = vmatpush1.bf16.msra.mxu0 0
      %2027 = vmatprep.mubr.bf16.mxu0 0
      %2028 = vmatmul.mubr.bf16.gmra.mrb[0].mxu0 %v1984
      %v2029 = vpop.f32.mrb[0].mxu0
      %v2030 = vadd.f32 0.0, %v2029
      %v2031 = vpop.f32.mrb[0].mxu0
      %v2032 = vadd.f32 0.0, %v2031
      %v2033 = vpop.f32.mrb[0].mxu0
      %v2034 = vpop.f32.mrb[0].mxu0
      %2035 = vdwg.mxu0
      %2036 = vmatprep.subr.bf16.mxu0 0
      %2037 = vmatpush1.bf16.msra.mxu0 %v1993
      %2038 = vmatprep.subr.bf16.mxu0 0
      %2039 = vmatpush1.bf16.msra.mxu0 0
      %2040 = vmatprep.subr.bf16.mxu0 0
      %2041 = vmatpush1.bf16.msra.mxu0 0
      %2042 = vmatprep.subr.bf16.mxu0 0
      %2043 = vmatpush1.bf16.msra.mxu0 0
      %2044 = vmatprep.subr.bf16.mxu0 0
      %2045 = vmatpush1.bf16.msra.mxu0 0
      %2046 = vmatprep.subr.bf16.mxu0 0
      %2047 = vmatpush1.bf16.msra.mxu0 0
      %2048 = vmatprep.subr.bf16.mxu0 0
      %2049 = vmatpush1.bf16.msra.mxu0 0
      %2050 = vmatprep.subr.bf16.mxu0 0
      %2051 = vmatpush1.bf16.msra.mxu0 0
      %2052 = vmatprep.subr.bf16.mxu0 0
      %2053 = vmatpush1.bf16.msra.mxu0 0
      %2054 = vmatprep.subr.bf16.mxu0 0
      %2055 = vmatpush1.bf16.msra.mxu0 0
      %2056 = vmatprep.subr.bf16.mxu0 0
      %2057 = vmatpush1.bf16.msra.mxu0 0
      %2058 = vmatprep.subr.bf16.mxu0 0
      %2059 = vmatpush1.bf16.msra.mxu0 0
      %2060 = vmatprep.subr.bf16.mxu0 0
      %2061 = vmatpush1.bf16.msra.mxu0 0
      %2062 = vmatprep.subr.bf16.mxu0 0
      %2063 = vmatpush1.bf16.msra.mxu0 0
      %2064 = vmatprep.subr.bf16.mxu0 0
      %2065 = vmatpush1.bf16.msra.mxu0 0
      %2066 = vmatprep.subr.bf16.mxu0 0
      %2067 = vmatpush1.bf16.msra.mxu0 0
      %2068 = vmatprep.mubr.bf16.mxu0 0
      %2069 = vmatmul.mubr.bf16.gmra.mrb[0].mxu0 %v1984
      %v2070 = vpop.f32.mrb[0].mxu0
      %v2071 = vadd.f32 0.0, %v2070
      %v2072 = vpop.f32.mrb[0].mxu0
      %v2073 = vpop.f32.mrb[0].mxu0
      %v2074 = vpop.f32.mrb[0].mxu0
      %2075 = vdwg.mxu0
      %v2076 = vadd.f32 %v1970, %v2030
      %v2077 = vadd.f32 %v1971, %v2032
      %v2078 = vadd.f32 %v1972, %v2071
      %s2079 = scalar_lea.vmem %s4, 28
      %v2080 = vld [vmem:[%s2079] sm:$0xf]
      %2081 = vrot.lane.b32.xlu0 %v1350, 91
      %v2082 = vpop.permute.xlu0 %2081
      %2083 = vrot.lane.b32.xlu0 %v1351, 91
      %v2084 = vpop.permute.xlu0 %2083
      %2085 = vrot.lane.b32.xlu0 %v1352, 91
      %v2086 = vpop.permute.xlu0 %2085
      %v2087 = vsel %vm1034, %v2082, %v2084
      %v2088 = vsel %vm1034, %v2084, %v2086
      %v2090 = vsel %vm1361, %v2080, 0
      %v2093 = vsel %vm1365, %v2087, 0
      %v2096 = vsel %vm1365, %v2088, 0
      %v2099 = vsel %vm1365, %v2086, 0
      %2101 = vmatprep.subr.bf16.mxu0 %v2096
      %2102 = vmatpush1.bf16.msra.mxu0 %v2093
      %2103 = vmatprep.subr.bf16.mxu0 0
      %2104 = vmatpush1.bf16.msra.mxu0 0
      %2105 = vmatprep.subr.bf16.mxu0 0
      %2106 = vmatpush1.bf16.msra.mxu0 0
      %2107 = vmatprep.subr.bf16.mxu0 0
      %2108 = vmatpush1.bf16.msra.mxu0 0
      %2109 = vmatprep.subr.bf16.mxu0 0
      %2110 = vmatpush1.bf16.msra.mxu0 0
      %2111 = vmatprep.subr.bf16.mxu0 0
      %2112 = vmatpush1.bf16.msra.mxu0 0
      %2113 = vmatprep.subr.bf16.mxu0 0
      %2114 = vmatpush1.bf16.msra.mxu0 0
      %2115 = vmatprep.subr.bf16.mxu0 0
      %2116 = vmatpush1.bf16.msra.mxu0 0
      %2117 = vmatprep.subr.bf16.mxu0 0
      %2118 = vmatpush1.bf16.msra.mxu0 0
      %2119 = vmatprep.subr.bf16.mxu0 0
      %2120 = vmatpush1.bf16.msra.mxu0 0
      %2121 = vmatprep.subr.bf16.mxu0 0
      %2122 = vmatpush1.bf16.msra.mxu0 0
      %2123 = vmatprep.subr.bf16.mxu0 0
      %2124 = vmatpush1.bf16.msra.mxu0 0
      %2125 = vmatprep.subr.bf16.mxu0 0
      %2126 = vmatpush1.bf16.msra.mxu0 0
      %2127 = vmatprep.subr.bf16.mxu0 0
      %2128 = vmatpush1.bf16.msra.mxu0 0
      %2129 = vmatprep.subr.bf16.mxu0 0
      %2130 = vmatpush1.bf16.msra.mxu0 0
      %2131 = vmatprep.subr.bf16.mxu0 0
      %2132 = vmatpush1.bf16.msra.mxu0 0
      %2133 = vmatprep.mubr.bf16.mxu0 0
      %2134 = vmatmul.mubr.bf16.gmra.mrb[0].mxu0 %v2090
      %v2135 = vpop.f32.mrb[0].mxu0
      %v2136 = vadd.f32 0.0, %v2135
      %v2137 = vpop.f32.mrb[0].mxu0
      %v2138 = vadd.f32 0.0, %v2137
      %v2139 = vpop.f32.mrb[0].mxu0
      %v2140 = vpop.f32.mrb[0].mxu0
      %2141 = vdwg.mxu0
      %2142 = vmatprep.subr.bf16.mxu0 0
      %2143 = vmatpush1.bf16.msra.mxu0 %v2099
      %2144 = vmatprep.subr.bf16.mxu0 0
      %2145 = vmatpush1.bf16.msra.mxu0 0
      %2146 = vmatprep.subr.bf16.mxu0 0
      %2147 = vmatpush1.bf16.msra.mxu0 0
      %2148 = vmatprep.subr.bf16.mxu0 0
      %2149 = vmatpush1.bf16.msra.mxu0 0
      %2150 = vmatprep.subr.bf16.mxu0 0
      %2151 = vmatpush1.bf16.msra.mxu0 0
      %2152 = vmatprep.subr.bf16.mxu0 0
      %2153 = vmatpush1.bf16.msra.mxu0 0
      %2154 = vmatprep.subr.bf16.mxu0 0
      %2155 = vmatpush1.bf16.msra.mxu0 0
      %2156 = vmatprep.subr.bf16.mxu0 0
      %2157 = vmatpush1.bf16.msra.mxu0 0
      %2158 = vmatprep.subr.bf16.mxu0 0
      %2159 = vmatpush1.bf16.msra.mxu0 0
      %2160 = vmatprep.subr.bf16.mxu0 0
      %2161 = vmatpush1.bf16.msra.mxu0 0
      %2162 = vmatprep.subr.bf16.mxu0 0
      %2163 = vmatpush1.bf16.msra.mxu0 0
      %2164 = vmatprep.subr.bf16.mxu0 0
      %2165 = vmatpush1.bf16.msra.mxu0 0
      %2166 = vmatprep.subr.bf16.mxu0 0
      %2167 = vmatpush1.bf16.msra.mxu0 0
      %2168 = vmatprep.subr.bf16.mxu0 0
      %2169 = vmatpush1.bf16.msra.mxu0 0
      %2170 = vmatprep.subr.bf16.mxu0 0
      %2171 = vmatpush1.bf16.msra.mxu0 0
      %2172 = vmatprep.subr.bf16.mxu0 0
      %2173 = vmatpush1.bf16.msra.mxu0 0
      %2174 = vmatprep.mubr.bf16.mxu0 0
      %2175 = vmatmul.mubr.bf16.gmra.mrb[0].mxu0 %v2090
      %v2176 = vpop.f32.mrb[0].mxu0
      %v2177 = vadd.f32 0.0, %v2176
      %v2178 = vpop.f32.mrb[0].mxu0
      %v2179 = vpop.f32.mrb[0].mxu0
      %v2180 = vpop.f32.mrb[0].mxu0
      %2181 = vdwg.mxu0
      %v2182 = vadd.f32 %v2076, %v2136
      %v2183 = vadd.f32 %v2077, %v2138
      %v2184 = vadd.f32 %v2078, %v2177
      %s2185 = scalar_lea.vmem %s4, 32
      %v2186 = vld [vmem:[%s2185] sm:$0xf]
      %2187 = vrot.lane.b32.xlu0 %v1350, 90
      %v2188 = vpop.permute.xlu0 %2187
      %2189 = vrot.lane.b32.xlu0 %v1351, 90
      %v2190 = vpop.permute.xlu0 %2189
      %2191 = vrot.lane.b32.xlu0 %v1352, 90
      %v2192 = vpop.permute.xlu0 %2191
      %v2193 = vsel %vm1141, %v2188, %v2190
      %v2194 = vsel %vm1141, %v2190, %v2192
      %v2196 = vsel %vm1361, %v2186, 0
      %v2199 = vsel %vm1365, %v2193, 0
      %v2202 = vsel %vm1365, %v2194, 0
      %v2205 = vsel %vm1365, %v2192, 0
      %2207 = vmatprep.subr.bf16.mxu0 %v2202
      %2208 = vmatpush1.bf16.msra.mxu0 %v2199
      %2209 = vmatprep.subr.bf16.mxu0 0
      %2210 = vmatpush1.bf16.msra.mxu0 0
      %2211 = vmatprep.subr.bf16.mxu0 0
      %2212 = vmatpush1.bf16.msra.mxu0 0
      %2213 = vmatprep.subr.bf16.mxu0 0
      %2214 = vmatpush1.bf16.msra.mxu0 0
      %2215 = vmatprep.subr.bf16.mxu0 0
      %2216 = vmatpush1.bf16.msra.mxu0 0
      %2217 = vmatprep.subr.bf16.mxu0 0
      %2218 = vmatpush1.bf16.msra.mxu0 0
      %2219 = vmatprep.subr.bf16.mxu0 0
      %2220 = vmatpush1.bf16.msra.mxu0 0
      %2221 = vmatprep.subr.bf16.mxu0 0
      %2222 = vmatpush1.bf16.msra.mxu0 0
      %2223 = vmatprep.subr.bf16.mxu0 0
      %2224 = vmatpush1.bf16.msra.mxu0 0
      %2225 = vmatprep.subr.bf16.mxu0 0
      %2226 = vmatpush1.bf16.msra.mxu0 0
      %2227 = vmatprep.subr.bf16.mxu0 0
      %2228 = vmatpush1.bf16.msra.mxu0 0
      %2229 = vmatprep.subr.bf16.mxu0 0
      %2230 = vmatpush1.bf16.msra.mxu0 0
      %2231 = vmatprep.subr.bf16.mxu0 0
      %2232 = vmatpush1.bf16.msra.mxu0 0
      %2233 = vmatprep.subr.bf16.mxu0 0
      %2234 = vmatpush1.bf16.msra.mxu0 0
      %2235 = vmatprep.subr.bf16.mxu0 0
      %2236 = vmatpush1.bf16.msra.mxu0 0
      %2237 = vmatprep.subr.bf16.mxu0 0
      %2238 = vmatpush1.bf16.msra.mxu0 0
      %2239 = vmatprep.mubr.bf16.mxu0 0
      %2240 = vmatmul.mubr.bf16.gmra.mrb[0].mxu0 %v2196
      %v2241 = vpop.f32.mrb[0].mxu0
      %v2242 = vadd.f32 0.0, %v2241
      %v2243 = vpop.f32.mrb[0].mxu0
      %v2244 = vadd.f32 0.0, %v2243
      %v2245 = vpop.f32.mrb[0].mxu0
      %v2246 = vpop.f32.mrb[0].mxu0
      %2247 = vdwg.mxu0
      %2248 = vmatprep.subr.bf16.mxu0 0
      %2249 = vmatpush1.bf16.msra.mxu0 %v2205
      %2250 = vmatprep.subr.bf16.mxu0 0
      %2251 = vmatpush1.bf16.msra.mxu0 0
      %2252 = vmatprep.subr.bf16.mxu0 0
      %2253 = vmatpush1.bf16.msra.mxu0 0
      %2254 = vmatprep.subr.bf16.mxu0 0
      %2255 = vmatpush1.bf16.msra.mxu0 0
      %2256 = vmatprep.subr.bf16.mxu0 0
      %2257 = vmatpush1.bf16.msra.mxu0 0
      %2258 = vmatprep.subr.bf16.mxu0 0
      %2259 = vmatpush1.bf16.msra.mxu0 0
      %2260 = vmatprep.subr.bf16.mxu0 0
      %2261 = vmatpush1.bf16.msra.mxu0 0
      %2262 = vmatprep.subr.bf16.mxu0 0
      %2263 = vmatpush1.bf16.msra.mxu0 0
      %2264 = vmatprep.subr.bf16.mxu0 0
      %2265 = vmatpush1.bf16.msra.mxu0 0
      %2266 = vmatprep.subr.bf16.mxu0 0
      %2267 = vmatpush1.bf16.msra.mxu0 0
      %2268 = vmatprep.subr.bf16.mxu0 0
      %2269 = vmatpush1.bf16.msra.mxu0 0
      %2270 = vmatprep.subr.bf16.mxu0 0
      %2271 = vmatpush1.bf16.msra.mxu0 0
      %2272 = vmatprep.subr.bf16.mxu0 0
      %2273 = vmatpush1.bf16.msra.mxu0 0
      %2274 = vmatprep.subr.bf16.mxu0 0
      %2275 = vmatpush1.bf16.msra.mxu0 0
      %2276 = vmatprep.subr.bf16.mxu0 0
      %2277 = vmatpush1.bf16.msra.mxu0 0
      %2278 = vmatprep.subr.bf16.mxu0 0
      %2279 = vmatpush1.bf16.msra.mxu0 0
      %2280 = vmatprep.mubr.bf16.mxu0 0
      %2281 = vmatmul.mubr.bf16.gmra.mrb[0].mxu0 %v2196
      %v2282 = vpop.f32.mrb[0].mxu0
      %v2283 = vadd.f32 0.0, %v2282
      %v2284 = vpop.f32.mrb[0].mxu0
      %v2285 = vpop.f32.mrb[0].mxu0
      %v2286 = vpop.f32.mrb[0].mxu0
      %2287 = vdwg.mxu0
      %v2288 = vadd.f32 %v2182, %v2242
      %v2289 = vadd.f32 %v2183, %v2244
      %v2290 = vadd.f32 %v2184, %v2283
      %v2291 = vld [vmem:[%s5] sm:$0xff]
      %2293 = vset.pattern.permute.xlu0 0
      %2294 = vperm.xlu0 %2293, %v2291
      %v2295 = vpop.permute.xlu0 %2294
      %v2297 = vmul.f32 %v2288, %v2295
      %v2298 = vmul.f32 %v2289, %v2295
      %v2299 = vmul.f32 %v2290, %v2295
      %v2300 = vld [vmem:[%s6] sm:$0xff]
      %2302 = vset.pattern.permute.xlu0 0
      %2303 = vperm.xlu0 %2302, %v2300
      %v2304 = vpop.permute.xlu0 %2303
      %v2306 = vadd.f32 %v2297, %v2304
      %v2307 = vadd.f32 %v2298, %v2304
      %v2308 = vadd.f32 %v2299, %v2304
      %v2309 = vmax.f32 %v2306, 0.0
      %v2310 = vmax.f32 %v2307, 0.0
      %v2311 = vmax.f32 %v2308, 0.0
      %vm2312 = vcmask 130048
      %2313 = vst.msk [vmem:[%s278] sm:$0xff] %vm2312, %v2309
      %2315 = vrot.lane.b32.xlu0 %v2309, 126
      %v2316 = vpop.permute.xlu0 %2315
      %vm2318 = vcmask 261248
      %2319 = vst.msk [vmem:[%s278] sm:$0xff] %vm2318, %v2316
      %2320 = vrot.lane.b32.xlu0 %v2309, 124
      %v2321 = vpop.permute.xlu0 %2320
      %vm2323 = vcmask 392448
      %2324 = vst.msk [vmem:[%s278] sm:$0xff] %vm2323, %v2321
      %2325 = vrot.lane.b32.xlu0 %v2309, 122
      %v2326 = vpop.permute.xlu0 %2325
      %vm2328 = vcmask 523648
      %2329 = vst.msk [vmem:[%s278] sm:$0xff] %vm2328, %v2326
      %2330 = vrot.lane.b32.xlu0 %v2309, 120
      %v2331 = vpop.permute.xlu0 %2330
      %vm2333 = vcmask 654848
      %2334 = vst.msk [vmem:[%s278] sm:$0xff] %vm2333, %v2331
      %2335 = vrot.lane.b32.xlu0 %v2309, 118
      %v2336 = vpop.permute.xlu0 %2335
      %vm2338 = vcmask 786048
      %2339 = vst.msk [vmem:[%s278] sm:$0xff] %vm2338, %v2336
      %2340 = vrot.lane.b32.xlu0 %v2309, 116
      %v2341 = vpop.permute.xlu0 %2340
      %vm2343 = vcmask 917248
      %2344 = vst.msk [vmem:[%s278] sm:$0xff] %vm2343, %v2341
      %2346 = vrot.lane.b32.xlu0 %v2309, 114
      %v2347 = vpop.permute.xlu0 %2346
      %2348 = vrot.lane.b32.xlu0 %v2310, 114
      %v2349 = vpop.permute.xlu0 %2348
      %vm2350 = vcmask 932864
      %v2351 = vsel %vm2350, %v2347, %v2349
      %vm2353 = vcmask 1048448
      %2354 = vst.msk [vmem:[%s278] sm:$0xff] %vm2353, %v2351
      %2355 = vrot.lane.b32.xlu0 %v2310, 112
      %v2356 = vpop.permute.xlu0 %2355
      %2358 = vst.msk [vmem:[%s278 + $0x8] sm:$0xff] %vm2312, %v2356
      %2359 = vrot.lane.b32.xlu0 %v2310, 110
      %v2360 = vpop.permute.xlu0 %2359
      %2362 = vst.msk [vmem:[%s278 + $0x8] sm:$0xff] %vm2318, %v2360
      %2363 = vrot.lane.b32.xlu0 %v2310, 108
      %v2364 = vpop.permute.xlu0 %2363
      %2366 = vst.msk [vmem:[%s278 + $0x8] sm:$0xff] %vm2323, %v2364
      %2367 = vrot.lane.b32.xlu0 %v2310, 106
      %v2368 = vpop.permute.xlu0 %2367
      %2370 = vst.msk [vmem:[%s278 + $0x8] sm:$0xff] %vm2328, %v2368
      %2371 = vrot.lane.b32.xlu0 %v2310, 104
      %v2372 = vpop.permute.xlu0 %2371
      %2374 = vst.msk [vmem:[%s278 + $0x8] sm:$0xff] %vm2333, %v2372
      %2375 = vrot.lane.b32.xlu0 %v2310, 102
      %v2376 = vpop.permute.xlu0 %2375
      %2378 = vst.msk [vmem:[%s278 + $0x8] sm:$0xff] %vm2338, %v2376
      %2380 = vrot.lane.b32.xlu0 %v2310, 100
      %v2381 = vpop.permute.xlu0 %2380
      %2382 = vrot.lane.b32.xlu0 %v2311, 100
      %v2383 = vpop.permute.xlu0 %2382
      %vm2384 = vcmask 818176
      %v2385 = vsel %vm2384, %v2381, %v2383
      %2387 = vst.msk [vmem:[%s278 + $0x8] sm:$0xff] %vm2343, %v2385
      %2388 = vrot.lane.b32.xlu0 %v2311, 98
      %v2389 = vpop.permute.xlu0 %2388
      %2391 = vst.msk [vmem:[%s278 + $0x8] sm:$0xff] %vm2353, %v2389
      %p2392 = scmp.lt.s32.totalorder %s18, 1
      %s2393 = scalar_select %p2392, %s18, 1
      %s2394 = smul.addr %s2393, 2
      %s2395 = smul.addr %s2394, 8
      %s2396 = scalar_lea.vmem %s7, %s2395
      // Predicated region
      $region49: #{double_conv.1} parent=47 // pred_check
        %p2397 = pneg %p188
      $region50: #{double_conv.1} parent=47 // pred_check_branch
        %2399 = sbr.rel (%p2397) target = $region52
      $region51: #{double_conv.1} parent=47 // pred_region
        _
      $region52: #{double_conv.1} parent=47 // pred_fallthru
        _
    $region48: #{double_conv.1} parent=5 // pred_fallthru
      _
    %p2400 = scmp.le.s32.totalorder 2, %s13
    // Predicated region
    $region53: #{double_conv.1} parent=5 // pred_check
      %p2401 = pneg %p2400
    $region54: #{double_conv.1} parent=5 // pred_check_branch
      %2403 = sbr.rel (%p2401) target = $region56
    $region55: #{double_conv.1} parent=5 // pred_region
      %s2404 = ssub.s32 %s13, 2
      // Predicated region
      $region57: #{double_conv.1} parent=55 // pred_check
        %p2405 = pneg %p194
      $region58: #{double_conv.1} parent=55 // pred_check_branch
        %2407 = sbr.rel (%p2405) target = $region60
      $region59: #{double_conv.1} parent=55 // pred_region
        %p2408 = scmp.lt.s32.totalorder %s19, 1
        %s2409 = scalar_select %p2408, %s19, 1
        %s2410 = smul.addr %s2409, 2
        %s2411 = smul.addr %s2410, 8
        %s2412 = scalar_lea.vmem %s7, %s2411
      $region60: #{double_conv.1} parent=55 // pred_fallthru
        _
    $region56: #{double_conv.1} parent=5 // pred_fallthru
      _
  $region6: #{double_conv.1} parent=0 // loop_footer
    %s17 = sadd.s32 1, %s13
  $region7: #{double_conv.1} parent=0 // loop_footer_branch
    %12 = sbr.rel target = $region3
  $region8: #{double_conv.1} parent=0 // loop_exit
    _

</llo_original>
